<compile_context>
chip_gen: v7x
topology: tpu7x:2x2x1
jax: 0.10.0
libtpu: 0.0.40
codegen_flags: <defaults>
</compile_context>

<pallas_src>
import jax
import jax.numpy as jnp
from jax.experimental import pallas as pl
from jax.experimental.pallas import tpu as pltpu

RGB_MEAN = (0.4914, 0.4822, 0.4465)
RGB_STD = (0.2023, 0.1994, 0.201)
GRAY_W = (0.299, 0.587, 0.114)

# Folded constants:  ((x - mean) / std) * w  ==  x * (w/std) + (-mean * w/std)
_GRAY_SCALE = tuple(w / s for w, s in zip(GRAY_W, RGB_STD))
_GRAY_BIAS = -sum(m * s for m, s in zip(RGB_MEAN, _GRAY_SCALE))

LEVELS = 4  # ImagePyramids([0, 1, 2, 3])

# 48 MiB scoped-VMEM limit: above the 16/32 MiB defaults (v5e / v6e-v7x) but under
# v7x's 64 MiB physical VMEM.  With the batch grid the per-step footprint at
# production sizes (double-buffered (1,3,480,640) input + pyramid outputs + resident
# selectors) is ~11 MiB, so this leaves ample headroom on every generation.
_VMEM_LIMIT_BYTES = 48 * 1024 * 1024


# ----------------------------------------------------------------------------
# Kernel 1: fused color-normalize + grayscale + 4-level avg pyramid (per image).
# ----------------------------------------------------------------------------
def _image_pyr_kernel(img_ref, cavg_ref, o0_ref, o1_ref, o2_ref, o3_ref):
    # img_ref : (1, 3, H, W)  one batch element (grid axis 0 = batch, "parallel")
    # cavg_ref: (W, W//2)     merged even+odd column selector, pre-scaled by 0.25
    # ok_ref  : (1, Hk, Wk)   level-k output for this batch element
    _, _, H, W = img_ref.shape

    # level 0: normalization + grayscale folded into one FMA chain and a single
    # contiguous, lane-dense store (no Python batch loop -- batch is the grid).
    o0_ref[0] = (img_ref[0, 0] * _GRAY_SCALE[0]
                 + img_ref[0, 1] * _GRAY_SCALE[1]
                 + img_ref[0, 2] * _GRAY_SCALE[2]
                 + _GRAY_BIAS)

    # levels 1..3: cascaded exact 2x2 average pools, entirely in VMEM.  Rows are
    # pooled with stride-2 sublane reads of the previous level's output ref; the
    # lane pick + the full 1/4 scaling are fused into ONE selector matmul.
    prev = o0_ref
    for k, out_ref in enumerate((o1_ref, o2_ref, o3_ref)):
        h_in, w_in = H >> k, W >> k
        lvl = prev.at[0]                                     # (h_in, w_in) ref view
        even = lvl[pl.ds(0, h_in // 2, stride=2), :]         # stride-2 sublane reads
        odd = lvl[pl.ds(1, h_in // 2, stride=2), :]
        row_sum = even + odd
        # NOTE(v6e): per-batch tiling shrinks matmul M to Hk/2 (<256 at deep
        # levels); the padding cost is negligible because those matmuls are tiny.
        out_ref[0] = jnp.dot(row_sum, cavg_ref[:w_in, :w_in // 2],
                             preferred_element_type=jnp.float32)
        prev = out_ref


# ----------------------------------------------------------------------------
# Kernel 2: fused inverse-depth preprocessing + 4-level max pyramid (per tensor).
# ----------------------------------------------------------------------------
def _depth_pyr_kernel(d_ref, ceven_ref, codd_ref,
                      o0_ref, o1_ref, o2_ref, o3_ref, mn_ref, mx_ref):
    # Two-phase grid (ph, b) = (2, B), both axes "arbitrary" (strictly sequential):
    #   phase 0: accumulate the per-tensor (whole tensor, incl. batch -- matching
    #            PyTorch's invD.min()/max()) min/max of clamp(1/d) into persistent
    #            (1,1) VMEM scratch scalars.
    #   phase 1: zero the global min, then the global max of the min-zeroed map
    #            (same in-place ordering as the PyTorch forward), and build the
    #            4-level max pyramid -- one batch element per step, so the kernel
    #            stays batch-tiled with no wrapper-side copies or reductions.
    # NOTE: exact f32 divide on purpose; both phases use the same in-kernel 1/d, so
    # the equality-based zeroing is bit-consistent.  Do NOT switch this path to
    # pl.reciprocal(approx=True) or bf16.
    _, H, W = d_ref.shape
    ph = pl.program_id(0)
    b = pl.program_id(1)

    @pl.when(jnp.logical_and(ph == 0, b == 0))
    def _init():
        mn_ref[...] = jnp.full((1, 1), jnp.inf, jnp.float32)
        mx_ref[...] = jnp.full((1, 1), -jnp.inf, jnp.float32)

    @pl.when(ph == 0)
    def _reduce():
        inv = jnp.clip(1.0 / d_ref[0], 0.0, 10.0)            # (H, W)
        mn_ref[...] = jnp.minimum(mn_ref[...], jnp.min(inv, keepdims=True))
        mx_ref[...] = jnp.maximum(mx_ref[...], jnp.max(inv, keepdims=True))

    @pl.when(ph == 1)
    def _pyramid():
        mn = mn_ref[...]                                      # (1, 1)
        # max of the min-zeroed map == raw max, unless all elements equal the min
        # (then the min-zeroed map is all zeros and its max is 0).
        mx = jnp.where(mx_ref[...] == mn, 0.0, mx_ref[...])
        inv = jnp.clip(1.0 / d_ref[0], 0.0, 10.0)
        inv = jnp.where(inv == mn, 0.0, inv)
        inv = jnp.where(inv == mx, 0.0, inv)
        o0_ref[0] = inv

        # levels 1..3: cascaded exact 2x2 max pools, entirely in VMEM.
        prev = o0_ref
        for k, out_ref in enumerate((o1_ref, o2_ref, o3_ref)):
            h_in, w_in = H >> k, W >> k
            lvl = prev.at[0]
            even = lvl[pl.ds(0, h_in // 2, stride=2), :]
            odd = lvl[pl.ds(1, h_in // 2, stride=2), :]
            row_max = jnp.maximum(even, odd)
            if w_in % 128 == 0:
                # Fast path (dominant full-width level at production sizes): fold
                # odd lanes onto even lanes with a lane roll (XLU slot, free) + VPU
                # max, then ONE exact 0/1 even-lane selector matmul -- halves the
                # f32 MXU work of the pooling.  shift = w_in-1 == -1 (mod w_in);
                # the wrapped last lane is never picked by the even selector.
                paired = jnp.maximum(
                    row_max, pltpu.roll(row_max, shift=w_in - 1, axis=1))
                out_ref[0] = jnp.dot(paired, ceven_ref[:w_in, :w_in // 2],
                                     preferred_element_type=jnp.float32)
            else:
                # Narrow levels: two exact 0/1 selector matmuls + VPU max (tiny).
                out_ref[0] = jnp.maximum(
                    jnp.dot(row_max, ceven_ref[:w_in, :w_in // 2],
                            preferred_element_type=jnp.float32),
                    jnp.dot(row_max, codd_ref[:w_in, :w_in // 2],
                            preferred_element_type=jnp.float32))
            prev = out_ref


# ----------------------------------------------------------------------------
# Wrappers
# ----------------------------------------------------------------------------
def _lane_pick_selectors(width, dtype):
    """(width, width//2) 0/1 matrices picking even / odd lanes (exact in f32)."""
    i = jnp.arange(width)[:, None]
    j = jnp.arange(width // 2)[None, :]
    even = (i == 2 * j).astype(dtype)
    odd = (i == 2 * j + 1).astype(dtype)
    return even, odd


def _pyramid_out(B, H, W, dtype, two_phase):
    shapes = tuple(jax.ShapeDtypeStruct((B, H >> k, W >> k), dtype)
                   for k in range(LEVELS))
    if two_phase:
        # Phase trick: every phase-0 step maps to output block 0, which is then
        # overwritten in place at step (1, 0) before its first (and only) HBM
        # writeback -- no garbage writes and no double writes ever reach HBM.
        specs = tuple(pl.BlockSpec((1, H >> k, W >> k),
                                   lambda ph, b: (b * ph, 0, 0))
                      for k in range(LEVELS))
    else:
        specs = tuple(pl.BlockSpec((1, H >> k, W >> k), lambda b: (b, 0, 0))
                      for k in range(LEVELS))
    return shapes, specs


def image_pyramid(img):
    """Fused normalize + gray + 4-level avg pyramid for ONE image (batch grid)."""
    B, C, H, W = img.shape
    assert C == 3 and H % 8 == 0 and W % 8 == 0
    c_even, c_odd = _lane_pick_selectors(W, img.dtype)
    c_avg = 0.25 * (c_even + c_odd)               # merged + pre-scaled avg selector
    out_shapes, out_specs = _pyramid_out(B, H, W, img.dtype, two_phase=False)
    levels = pl.pallas_call(
        _image_pyr_kernel,
        out_shape=out_shapes,
        grid=(B,),
        in_specs=[pl.BlockSpec((1, 3, H, W), lambda b: (b, 0, 0, 0)),
                  pl.BlockSpec((W, W // 2), lambda b: (0, 0))],
        out_specs=out_specs,
        compiler_params=pltpu.CompilerParams(
            dimension_semantics=("parallel",),
            vmem_limit_bytes=_VMEM_LIMIT_BYTES),
    )(img, c_avg)
    # (B, Hk, Wk) -> (B, 1, Hk, Wk): free singleton-channel reshape, no slice copies.
    return [lv[:, None] for lv in levels]


def depth_pyramid(depth):
    """Fused inverse-depth preprocessing + 4-level max pyramid for ONE depth map."""
    B, C, H, W = depth.shape
    assert C == 1 and H % 8 == 0 and W % 8 == 0
    d = depth.reshape(B, H, W)                    # drop singleton channel: free
    c_even, c_odd = _lane_pick_selectors(W, depth.dtype)
    out_shapes, out_specs = _pyramid_out(B, H, W, depth.dtype, two_phase=True)
    levels = pl.pallas_call(
        _depth_pyr_kernel,
        out_shape=out_shapes,
        grid=(2, B),                              # (phase, batch)
        in_specs=[pl.BlockSpec((1, H, W), lambda ph, b: (b, 0, 0)),
                  pl.BlockSpec((W, W // 2), lambda ph, b: (0, 0)),
                  pl.BlockSpec((W, W // 2), lambda ph, b: (0, 0))],
        out_specs=out_specs,
        scratch_shapes=[pltpu.VMEM((1, 1), jnp.float32),    # running global min
                        pltpu.VMEM((1, 1), jnp.float32)],   # running global max
        # Both axes MUST stay sequential: phase ordering and the cross-batch
        # min/max accumulation in persistent scratch would break under megacore
        # sharding of the batch axis.
        compiler_params=pltpu.CompilerParams(
            dimension_semantics=("arbitrary", "arbitrary"),
            vmem_limit_bytes=_VMEM_LIMIT_BYTES),
    )(d, c_even, c_odd)
    return [lv[:, None] for lv in levels]


# ----------------------------------------------------------------------------
# Forward pass of LeastSquareTracking ('RGB' encoder, 'None' m-estimator,
# 'Direct-Nodamping' solver).
# ----------------------------------------------------------------------------
@jax.jit
def least_square_tracking_forward(img0, img1, depth0, depth1, K):
    # encoder 'RGB': fused color_normalize + __color3to1 + image pyramids (Pallas)
    x0 = image_pyramid(img0)
    x1 = image_pyramid(img1)
    # inverse-depth preprocessing + depth pyramids (Pallas)
    d0 = depth_pyramid(depth0)
    d1 = depth_pyramid(depth1)

    B = depth0.shape[0]
    R0 = jnp.broadcast_to(jnp.eye(3, dtype=img0.dtype), (B, 3, 3))
    t0 = jnp.zeros((B, 3, 1), dtype=img0.dtype)
    prior_W = jnp.ones(d0[3].shape, dtype=d0[3].dtype)        # DeepRobustEstimator('None')
    K1, K2, K3 = K >> 1, K >> 2, K >> 3                       # per-level intrinsics

    # TODO(synk): the TrustRegion iterative pose refinement (tr_update3..0) depends on
    # the `TrustRegion` class and the mocked `geometry` module in the reference source,
    # so the refined pose cannot be reproduced; the initial pose [R0, t0] and all
    # solver inputs are returned instead.
    return {
        "pose_R": R0,
        "pose_t": t0,
        "prior_W": prior_W,
        "feat_pyr0": x0,
        "feat_pyr1": x1,
        "invd_pyr0": d0,
        "invd_pyr1": d1,
        "K_levels": (K, K1, K2, K3),
    }


# ----------------------------------------------------------------------------
# Pure-JAX reference (correctness of the Pallas kernels)
# ----------------------------------------------------------------------------
def _ref_gray(img):
    mean = jnp.array(RGB_MEAN, img.dtype).reshape(1, 3, 1, 1)
    std = jnp.array(RGB_STD, img.dtype).reshape(1, 3, 1, 1)
    n = (img - mean) / std
    return (n[:, 0] * 0.299 + n[:, 1] * 0.587 + n[:, 2] * 0.114)[:, None]


def _ref_inv_depth(depth):
    inv = jnp.clip(1.0 / depth, 0.0, 10.0)
    inv = jnp.where(inv == jnp.min(inv), 0.0, inv)
    inv = jnp.where(inv == jnp.max(inv), 0.0, inv)
    return inv


def _ref_pool(x, op):
    B, C, H, W = x.shape
    x4 = x.reshape(B, C, H // 2, 2, W // 2, 2)
    return x4.mean(axis=(3, 5)) if op == "avg" else x4.max(axis=(3, 5))


def _ref_pyramid(x, op, levels=LEVELS):
    pyr = [x]
    for _ in range(levels - 1):
        x = _ref_pool(x, op)
        pyr.append(x)
    return pyr


if __name__ == "__main__":
    key = jax.random.PRNGKey(0)
    k0, k1, k2, k3 = jax.random.split(key, 4)
    # W = 128 so the rolled fast path of the max pool is exercised (level 0 -> 1),
    # while the narrower deeper levels (64 / 32 wide) exercise the 2-selector
    # fallback.  Still small: each image is 2*3*32*128 floats (~98 KiB).
    B, H, W = 2, 32, 128
    img0 = jax.random.uniform(k0, (B, 3, H, W), jnp.float32)
    img1 = jax.random.uniform(k1, (B, 3, H, W), jnp.float32)
    depth0 = jax.random.uniform(k2, (B, 1, H, W), jnp.float32, minval=0.5, maxval=5.0)
    depth1 = jax.random.uniform(k3, (B, 1, H, W), jnp.float32, minval=0.5, maxval=5.0)
    K = jnp.array([[320, 320, 64, 16], [320, 320, 64, 16]], dtype=jnp.int32)

    out = jax.block_until_ready(
        least_square_tracking_forward(img0, img1, depth0, depth1, K))

    # --- sanity checks against the pure-JAX reference ---
    checks = [
        (out["feat_pyr0"], _ref_pyramid(_ref_gray(img0), "avg")),
        (out["feat_pyr1"], _ref_pyramid(_ref_gray(img1), "avg")),
        (out["invd_pyr0"], _ref_pyramid(_ref_inv_depth(depth0), "max")),
        (out["invd_pyr1"], _ref_pyramid(_ref_inv_depth(depth1), "max")),
    ]
    for got, ref in checks:
        for a, b in zip(got, ref):
            assert a.shape == b.shape, (a.shape, b.shape)
            err = float(jnp.max(jnp.abs(a - b)))
            assert err < 1e-4, err
    assert float(jnp.max(out["invd_pyr0"][0])) <= 10.0
    assert float(jnp.min(out["invd_pyr0"][0])) >= 0.0
    assert out["pose_R"].shape == (B, 3, 3) and out["pose_t"].shape == (B, 3, 1)

    print("KERNEL_OK")
</pallas_src>

<mosaic_0001>
module attributes {stable_mosaic.version = 11 : i64} {
  func.func @_depth_pyr_kernel(%arg0: i32, %arg1: i32, %arg2: memref<1x32x128xf32, #tpu.memory_space<vmem>>, %arg3: memref<128x64xf32, #tpu.memory_space<vmem>>, %arg4: memref<128x64xf32, #tpu.memory_space<vmem>>, %arg5: memref<1x32x128xf32, #tpu.memory_space<vmem>>, %arg6: memref<1x16x64xf32, #tpu.memory_space<vmem>>, %arg7: memref<1x8x32xf32, #tpu.memory_space<vmem>>, %arg8: memref<1x4x16xf32, #tpu.memory_space<vmem>>, %arg9: memref<1x1xf32, #tpu.memory_space<vmem>>, %arg10: memref<1x1xf32, #tpu.memory_space<vmem>>) attributes {dimension_semantics = [#tpu.dimension_semantics<arbitrary>, #tpu.dimension_semantics<arbitrary>], iteration_bounds = array<i64: 2, 2>, scalar_prefetch = 0 : i64, scratch_operands = 2 : i64, tpu.core_type = #tpu.core_type<tc>, window_params = [{transform_indices = @transform_0, window_bounds = array<i64: 1, 32, 128>}, {pipeline_mode = #tpu.pipeline_mode<synchronous>, transform_indices = @transform_1, window_bounds = array<i64: 128, 64>}, {pipeline_mode = #tpu.pipeline_mode<synchronous>, transform_indices = @transform_2, window_bounds = array<i64: 128, 64>}, {transform_indices = @transform_3, window_bounds = array<i64: 1, 32, 128>}, {transform_indices = @transform_4, window_bounds = array<i64: 1, 16, 64>}, {transform_indices = @transform_5, window_bounds = array<i64: 1, 8, 32>}, {transform_indices = @transform_6, window_bounds = array<i64: 1, 4, 16>}]} {
    %c0_i32 = arith.constant 0 : i32
    %0 = arith.cmpi eq, %arg0, %c0_i32 : i32
    %c0_i32_0 = arith.constant 0 : i32
    %1 = arith.cmpi eq, %arg1, %c0_i32_0 : i32
    %2 = arith.andi %0, %1 : i1
    %3 = arith.extui %2 : i1 to i32
    %c0_i32_1 = arith.constant 0 : i32
    %4 = arith.cmpi ne, %3, %c0_i32_1 : i32
    scf.if %4 {
      %cst = arith.constant 0x7F800000 : f32
      %11 = vector.broadcast %cst : f32 to vector<1x1xf32>
      %c0 = arith.constant 0 : index
      %c0_5 = arith.constant 0 : index
      %12 = vector.load %arg9[%c0, %c0_5] : memref<1x1xf32, #tpu.memory_space<vmem>>, vector<1x1xf32>
      tpu.vector_store %arg9[%c0, %c0_5], %11 {strides = array<i32>} : memref<1x1xf32, #tpu.memory_space<vmem>>, vector<1x1xf32>,
      %cst_6 = arith.constant 0xFF800000 : f32
      %13 = vector.broadcast %cst_6 : f32 to vector<1x1xf32>
      %c0_7 = arith.constant 0 : index
      %c0_8 = arith.constant 0 : index
      %14 = vector.load %arg10[%c0_7, %c0_8] : memref<1x1xf32, #tpu.memory_space<vmem>>, vector<1x1xf32>
      tpu.vector_store %arg10[%c0_7, %c0_8], %13 {strides = array<i32>} : memref<1x1xf32, #tpu.memory_space<vmem>>, vector<1x1xf32>,
    } else {
    }
    %c0_i32_2 = arith.constant 0 : i32
    %5 = arith.cmpi eq, %arg0, %c0_i32_2 : i32
    %6 = arith.extui %5 : i1 to i32
    %c0_i32_3 = arith.constant 0 : i32
    %7 = arith.cmpi ne, %6, %c0_i32_3 : i32
    scf.if %7 {
      %c0 = arith.constant 0 : index
      %c0_5 = arith.constant 0 : index
      %c0_6 = arith.constant 0 : index
      %11 = vector.load %arg2[%c0, %c0_5, %c0_6] : memref<1x32x128xf32, #tpu.memory_space<vmem>>, vector<1x32x128xf32>
      %12 = vector.shape_cast %11 : vector<1x32x128xf32> to vector<32x128xf32>
      %cst = arith.constant 1.000000e+00 : f32
      %13 = vector.broadcast %cst : f32 to vector<32x128xf32>
      %14 = arith.divf %13, %12 : vector<32x128xf32>
      %cst_7 = arith.constant 0.000000e+00 : f32
      %cst_8 = arith.constant 1.000000e+01 : f32
      %15 = vector.broadcast %cst_7 : f32 to vector<32x128xf32>
      %16 = arith.maximumf %15, %14 : vector<32x128xf32>
      %17 = vector.broadcast %cst_8 : f32 to vector<32x128xf32>
      %18 = arith.minimumf %17, %16 : vector<32x128xf32>
      %c0_9 = arith.constant 0 : index
      %c0_10 = arith.constant 0 : index
      %19 = vector.load %arg9[%c0_9, %c0_10] : memref<1x1xf32, #tpu.memory_space<vmem>>, vector<1x1xf32>
      %20 = vector.shape_cast %18 : vector<32x128xf32> to vector<1x32x128xf32>
      %cst_11 = arith.constant dense<0x7F800000> : vector<1xf32>
      %21 = vector.multi_reduction <minimumf>, %20, %cst_11 [1, 2] : vector<1x32x128xf32> to vector<1xf32>
      %22 = vector.shape_cast %21 : vector<1xf32> to vector<1x1x1xf32>
      %23 = vector.extract %22[0, 0, 0] : f32 from vector<1x1x1xf32>
      %24 = vector.broadcast %23 : f32 to vector<1x1xf32>
      %25 = arith.minimumf %19, %24 : vector<1x1xf32>
      %c0_12 = arith.constant 0 : index
      %c0_13 = arith.constant 0 : index
      %26 = vector.load %arg9[%c0_12, %c0_13] : memref<1x1xf32, #tpu.memory_space<vmem>>, vector<1x1xf32>
      tpu.vector_store %arg9[%c0_12, %c0_13], %25 {strides = array<i32>} : memref<1x1xf32, #tpu.memory_space<vmem>>, vector<1x1xf32>,
      %c0_14 = arith.constant 0 : index
      %c0_15 = arith.constant 0 : index
      %27 = vector.load %arg10[%c0_14, %c0_15] : memref<1x1xf32, #tpu.memory_space<vmem>>, vector<1x1xf32>
      %28 = vector.shape_cast %18 : vector<32x128xf32> to vector<1x32x128xf32>
      %cst_16 = arith.constant dense<0xFF800000> : vector<1xf32>
      %29 = vector.multi_reduction <maximumf>, %28, %cst_16 [1, 2] : vector<1x32x128xf32> to vector<1xf32>
      %30 = vector.shape_cast %29 : vector<1xf32> to vector<1x1x1xf32>
      %31 = vector.extract %30[0, 0, 0] : f32 from vector<1x1x1xf32>
      %32 = vector.broadcast %31 : f32 to vector<1x1xf32>
      %33 = arith.maximumf %27, %32 : vector<1x1xf32>
      %c0_17 = arith.constant 0 : index
      %c0_18 = arith.constant 0 : index
      %34 = vector.load %arg10[%c0_17, %c0_18] : memref<1x1xf32, #tpu.memory_space<vmem>>, vector<1x1xf32>
      tpu.vector_store %arg10[%c0_17, %c0_18], %33 {strides = array<i32>} : memref<1x1xf32, #tpu.memory_space<vmem>>, vector<1x1xf32>,
    } else {
    }
    %c1_i32 = arith.constant 1 : i32
    %8 = arith.cmpi eq, %arg0, %c1_i32 : i32
    %9 = arith.extui %8 : i1 to i32
    %c0_i32_4 = arith.constant 0 : i32
    %10 = arith.cmpi ne, %9, %c0_i32_4 : i32
    scf.if %10 {
      %c0 = arith.constant 0 : index
      %c0_5 = arith.constant 0 : index
      %11 = vector.load %arg9[%c0, %c0_5] : memref<1x1xf32, #tpu.memory_space<vmem>>, vector<1x1xf32>
      %c0_6 = arith.constant 0 : index
      %c0_7 = arith.constant 0 : index
      %12 = vector.load %arg10[%c0_6, %c0_7] : memref<1x1xf32, #tpu.memory_space<vmem>>, vector<1x1xf32>
      %13 = arith.cmpf oeq, %12, %11 : vector<1x1xf32>
      %c0_8 = arith.constant 0 : index
      %c0_9 = arith.constant 0 : index
      %14 = vector.load %arg10[%c0_8, %c0_9] : memref<1x1xf32, #tpu.memory_space<vmem>>, vector<1x1xf32>
      %cst = arith.constant 0.000000e+00 : f32
      %15 = vector.broadcast %cst : f32 to vector<1x1xf32>
      %16 = arith.select %13, %15, %14 : vector<1x1xi1>, vector<1x1xf32>
      %c0_10 = arith.constant 0 : index
      %c0_11 = arith.constant 0 : index
      %c0_12 = arith.constant 0 : index
      %17 = vector.load %arg2[%c0_10, %c0_11, %c0_12] : memref<1x32x128xf32, #tpu.memory_space<vmem>>, vector<1x32x128xf32>
      %18 = vector.shape_cast %17 : vector<1x32x128xf32> to vector<32x128xf32>
      %cst_13 = arith.constant 1.000000e+00 : f32
      %19 = vector.broadcast %cst_13 : f32 to vector<32x128xf32>
      %20 = arith.divf %19, %18 : vector<32x128xf32>
      %cst_14 = arith.constant 0.000000e+00 : f32
      %cst_15 = arith.constant 1.000000e+01 : f32
      %21 = vector.broadcast %cst_14 : f32 to vector<32x128xf32>
      %22 = arith.maximumf %21, %20 : vector<32x128xf32>
      %23 = vector.broadcast %cst_15 : f32 to vector<32x128xf32>
      %24 = arith.minimumf %23, %22 : vector<32x128xf32>
      %25 = vector.broadcast %11 : vector<1x1xf32> to vector<32x128xf32>
      %26 = arith.cmpf oeq, %24, %25 : vector<32x128xf32>
      %cst_16 = arith.constant 0.000000e+00 : f32
      %27 = vector.broadcast %cst_16 : f32 to vector<32x128xf32>
      %28 = arith.select %26, %27, %24 : vector<32x128xi1>, vector<32x128xf32>
      %29 = vector.broadcast %16 : vector<1x1xf32> to vector<32x128xf32>
      %30 = arith.cmpf oeq, %28, %29 : vector<32x128xf32>
      %cst_17 = arith.constant 0.000000e+00 : f32
      %31 = vector.broadcast %cst_17 : f32 to vector<32x128xf32>
      %32 = arith.select %30, %31, %28 : vector<32x128xi1>, vector<32x128xf32>
      %c0_18 = arith.constant 0 : index
      %c0_19 = arith.constant 0 : index
      %c0_20 = arith.constant 0 : index
      %33 = vector.load %arg5[%c0_18, %c0_19, %c0_20] : memref<1x32x128xf32, #tpu.memory_space<vmem>>, vector<1x32x128xf32>
      %34 = vector.shape_cast %33 : vector<1x32x128xf32> to vector<32x128xf32>
      %35 = vector.shape_cast %32 : vector<32x128xf32> to vector<1x32x128xf32>
      tpu.vector_store %arg5[%c0_18, %c0_19, %c0_20], %35 {strides = array<i32>} : memref<1x32x128xf32, #tpu.memory_space<vmem>>, vector<1x32x128xf32>,
      %c0_i32_21 = arith.constant 0 : i32
      %c0_i32_22 = arith.constant 0 : i32
      %c0_i32_23 = arith.constant 0 : i32
      %36 = tpu.memref_slice %arg5[%c0_i32_21, %c0_i32_22, %c0_i32_23] : memref<1x32x128xf32, #tpu.memory_space<vmem>> -> memref<1x32x128xf32, #tpu.memory_space<vmem>>
      %37 = tpu.memref_squeeze %36 : memref<1x32x128xf32, #tpu.memory_space<vmem>> -> memref<32x128xf32, #tpu.memory_space<vmem>>
      %c0_24 = arith.constant 0 : index
      %c0_25 = arith.constant 0 : index
      %38 = tpu.strided_load %37[%c0_24, %c0_25] {strides = array<i32: 2, 1>} : memref<32x128xf32, #tpu.memory_space<vmem>>, vector<16x128xf32>
      %c0_i32_26 = arith.constant 0 : i32
      %c0_i32_27 = arith.constant 0 : i32
      %c0_i32_28 = arith.constant 0 : i32
      %39 = tpu.memref_slice %arg5[%c0_i32_26, %c0_i32_27, %c0_i32_28] : memref<1x32x128xf32, #tpu.memory_space<vmem>> -> memref<1x32x128xf32, #tpu.memory_space<vmem>>
      %40 = tpu.memref_squeeze %39 : memref<1x32x128xf32, #tpu.memory_space<vmem>> -> memref<32x128xf32, #tpu.memory_space<vmem>>
      %c1 = arith.constant 1 : index
      %c0_29 = arith.constant 0 : index
      %41 = tpu.strided_load %40[%c1, %c0_29] {strides = array<i32: 2, 1>} : memref<32x128xf32, #tpu.memory_space<vmem>>, vector<16x128xf32>
      %42 = arith.maximumf %38, %41 : vector<16x128xf32>
      %c127_i32 = arith.constant 127 : i32
      %43 = tpu.dynamic_rotate %42 by %c127_i32 dim 1 : vector<16x128xf32>, i32 -> vector<16x128xf32>
      %44 = arith.maximumf %42, %43 : vector<16x128xf32>
      %c0_30 = arith.constant 0 : index
      %c0_31 = arith.constant 0 : index
      %45 = vector.load %arg3[%c0_30, %c0_31] : memref<128x64xf32, #tpu.memory_space<vmem>>, vector<128x64xf32>
      %cst_32 = arith.constant dense<0.000000e+00> : vector<16x64xf32>
      %46 = tpu.matmul %44, %45, %cst_32 {dimension_numbers = #tpu.dot_dimension_numbers<[1], [0], [0], [1], [0, 0, 1, 1], [], []>} : vector<16x128xf32>, vector<128x64xf32>, vector<16x64xf32> -> vector<16x64xf32>
      %c0_33 = arith.constant 0 : index
      %c0_34 = arith.constant 0 : index
      %c0_35 = arith.constant 0 : index
      %47 = vector.load %arg6[%c0_33, %c0_34, %c0_35] : memref<1x16x64xf32, #tpu.memory_space<vmem>>, vector<1x16x64xf32>
      %48 = vector.shape_cast %47 : vector<1x16x64xf32> to vector<16x64xf32>
      %49 = vector.shape_cast %46 : vector<16x64xf32> to vector<1x16x64xf32>
      tpu.vector_store %arg6[%c0_33, %c0_34, %c0_35], %49 {strides = array<i32>} : memref<1x16x64xf32, #tpu.memory_space<vmem>>, vector<1x16x64xf32>,
      %c0_i32_36 = arith.constant 0 : i32
      %c0_i32_37 = arith.constant 0 : i32
      %c0_i32_38 = arith.constant 0 : i32
      %50 = tpu.memref_slice %arg6[%c0_i32_36, %c0_i32_37, %c0_i32_38] : memref<1x16x64xf32, #tpu.memory_space<vmem>> -> memref<1x16x64xf32, #tpu.memory_space<vmem>>
      %51 = tpu.memref_squeeze %50 : memref<1x16x64xf32, #tpu.memory_space<vmem>> -> memref<16x64xf32, #tpu.memory_space<vmem>>
      %c0_39 = arith.constant 0 : index
      %c0_40 = arith.constant 0 : index
      %52 = tpu.strided_load %51[%c0_39, %c0_40] {strides = array<i32: 2, 1>} : memref<16x64xf32, #tpu.memory_space<vmem>>, vector<8x64xf32>
      %c0_i32_41 = arith.constant 0 : i32
      %c0_i32_42 = arith.constant 0 : i32
      %c0_i32_43 = arith.constant 0 : i32
      %53 = tpu.memref_slice %arg6[%c0_i32_41, %c0_i32_42, %c0_i32_43] : memref<1x16x64xf32, #tpu.memory_space<vmem>> -> memref<1x16x64xf32, #tpu.memory_space<vmem>>
      %54 = tpu.memref_squeeze %53 : memref<1x16x64xf32, #tpu.memory_space<vmem>> -> memref<16x64xf32, #tpu.memory_space<vmem>>
      %c1_44 = arith.constant 1 : index
      %c0_45 = arith.constant 0 : index
      %55 = tpu.strided_load %54[%c1_44, %c0_45] {strides = array<i32: 2, 1>} : memref<16x64xf32, #tpu.memory_space<vmem>>, vector<8x64xf32>
      %56 = arith.maximumf %52, %55 : vector<8x64xf32>
      %c0_46 = arith.constant 0 : index
      %c0_47 = arith.constant 0 : index
      %57 = vector.load %arg3[%c0_46, %c0_47] : memref<128x64xf32, #tpu.memory_space<vmem>>, vector<64x32xf32>
      %cst_48 = arith.constant dense<0.000000e+00> : vector<8x32xf32>
      %58 = tpu.matmul %56, %57, %cst_48 {dimension_numbers = #tpu.dot_dimension_numbers<[1], [0], [0], [1], [0, 0, 1, 1], [], []>} : vector<8x64xf32>, vector<64x32xf32>, vector<8x32xf32> -> vector<8x32xf32>
      %c0_49 = arith.constant 0 : index
      %c0_50 = arith.constant 0 : index
      %59 = vector.load %arg4[%c0_49, %c0_50] : memref<128x64xf32, #tpu.memory_space<vmem>>, vector<64x32xf32>
      %cst_51 = arith.constant dense<0.000000e+00> : vector<8x32xf32>
      %60 = tpu.matmul %56, %59, %cst_51 {dimension_numbers = #tpu.dot_dimension_numbers<[1], [0], [0], [1], [0, 0, 1, 1], [], []>} : vector<8x64xf32>, vector<64x32xf32>, vector<8x32xf32> -> vector<8x32xf32>
      %61 = arith.maximumf %58, %60 : vector<8x32xf32>
      %c0_52 = arith.constant 0 : index
      %c0_53 = arith.constant 0 : index
      %c0_54 = arith.constant 0 : index
      %62 = vector.load %arg7[%c0_52, %c0_53, %c0_54] : memref<1x8x32xf32, #tpu.memory_space<vmem>>, vector<1x8x32xf32>
      %63 = vector.shape_cast %62 : vector<1x8x32xf32> to vector<8x32xf32>
      %64 = vector.shape_cast %61 : vector<8x32xf32> to vector<1x8x32xf32>
      tpu.vector_store %arg7[%c0_52, %c0_53, %c0_54], %64 {strides = array<i32>} : memref<1x8x32xf32, #tpu.memory_space<vmem>>, vector<1x8x32xf32>,
      %c0_i32_55 = arith.constant 0 : i32
      %c0_i32_56 = arith.constant 0 : i32
      %c0_i32_57 = arith.constant 0 : i32
      %65 = tpu.memref_slice %arg7[%c0_i32_55, %c0_i32_56, %c0_i32_57] : memref<1x8x32xf32, #tpu.memory_space<vmem>> -> memref<1x8x32xf32, #tpu.memory_space<vmem>>
      %66 = tpu.memref_squeeze %65 : memref<1x8x32xf32, #tpu.memory_space<vmem>> -> memref<8x32xf32, #tpu.memory_space<vmem>>
      %c0_58 = arith.constant 0 : index
      %c0_59 = arith.constant 0 : index
      %67 = tpu.strided_load %66[%c0_58, %c0_59] {strides = array<i32: 2, 1>} : memref<8x32xf32, #tpu.memory_space<vmem>>, vector<4x32xf32>
      %c0_i32_60 = arith.constant 0 : i32
      %c0_i32_61 = arith.constant 0 : i32
      %c0_i32_62 = arith.constant 0 : i32
      %68 = tpu.memref_slice %arg7[%c0_i32_60, %c0_i32_61, %c0_i32_62] : memref<1x8x32xf32, #tpu.memory_space<vmem>> -> memref<1x8x32xf32, #tpu.memory_space<vmem>>
      %69 = tpu.memref_squeeze %68 : memref<1x8x32xf32, #tpu.memory_space<vmem>> -> memref<8x32xf32, #tpu.memory_space<vmem>>
      %c1_63 = arith.constant 1 : index
      %c0_64 = arith.constant 0 : index
      %70 = tpu.strided_load %69[%c1_63, %c0_64] {strides = array<i32: 2, 1>} : memref<8x32xf32, #tpu.memory_space<vmem>>, vector<4x32xf32>
      %71 = arith.maximumf %67, %70 : vector<4x32xf32>
      %c0_65 = arith.constant 0 : index
      %c0_66 = arith.constant 0 : index
      %72 = vector.load %arg3[%c0_65, %c0_66] : memref<128x64xf32, #tpu.memory_space<vmem>>, vector<32x16xf32>
      %cst_67 = arith.constant dense<0.000000e+00> : vector<4x16xf32>
      %73 = tpu.matmul %71, %72, %cst_67 {dimension_numbers = #tpu.dot_dimension_numbers<[1], [0], [0], [1], [0, 0, 1, 1], [], []>} : vector<4x32xf32>, vector<32x16xf32>, vector<4x16xf32> -> vector<4x16xf32>
      %c0_68 = arith.constant 0 : index
      %c0_69 = arith.constant 0 : index
      %74 = vector.load %arg4[%c0_68, %c0_69] : memref<128x64xf32, #tpu.memory_space<vmem>>, vector<32x16xf32>
      %cst_70 = arith.constant dense<0.000000e+00> : vector<4x16xf32>
      %75 = tpu.matmul %71, %74, %cst_70 {dimension_numbers = #tpu.dot_dimension_numbers<[1], [0], [0], [1], [0, 0, 1, 1], [], []>} : vector<4x32xf32>, vector<32x16xf32>, vector<4x16xf32> -> vector<4x16xf32>
      %76 = arith.maximumf %73, %75 : vector<4x16xf32>
      %c0_71 = arith.constant 0 : index
      %c0_72 = arith.constant 0 : index
      %c0_73 = arith.constant 0 : index
      %77 = vector.load %arg8[%c0_71, %c0_72, %c0_73] : memref<1x4x16xf32, #tpu.memory_space<vmem>>, vector<1x4x16xf32>
      %78 = vector.shape_cast %77 : vector<1x4x16xf32> to vector<4x16xf32>
      %79 = vector.shape_cast %76 : vector<4x16xf32> to vector<1x4x16xf32>
      tpu.vector_store %arg8[%c0_71, %c0_72, %c0_73], %79 {strides = array<i32>} : memref<1x4x16xf32, #tpu.memory_space<vmem>>, vector<1x4x16xf32>,
    } else {
    }
    return
  }
  func.func @transform_0(%arg0: i32, %arg1: i32) -> (i32, i32, i32) {
    %c0_i32 = arith.constant 0 : i32
    %c0_i32_0 = arith.constant 0 : i32
    %c0_i32_1 = arith.constant 0 : i32
    return %arg1, %c0_i32, %c0_i32_0 : i32, i32, i32
  }
  func.func @transform_1(%arg0: i32, %arg1: i32) -> (i32, i32) {
    %c0_i32 = arith.constant 0 : i32
    %c0_i32_0 = arith.constant 0 : i32
    %c0_i32_1 = arith.constant 0 : i32
    return %c0_i32, %c0_i32_0 : i32, i32
  }
  func.func @transform_2(%arg0: i32, %arg1: i32) -> (i32, i32) {
    %c0_i32 = arith.constant 0 : i32
    %c0_i32_0 = arith.constant 0 : i32
    %c0_i32_1 = arith.constant 0 : i32
    return %c0_i32, %c0_i32_0 : i32, i32
  }
  func.func @transform_3(%arg0: i32, %arg1: i32) -> (i32, i32, i32) {
    %0 = arith.muli %arg1, %arg0 : i32
    %c0_i32 = arith.constant 0 : i32
    %c0_i32_0 = arith.constant 0 : i32
    %c0_i32_1 = arith.constant 0 : i32
    return %0, %c0_i32, %c0_i32_0 : i32, i32, i32
  }
  func.func @transform_4(%arg0: i32, %arg1: i32) -> (i32, i32, i32) {
    %0 = arith.muli %arg1, %arg0 : i32
    %c0_i32 = arith.constant 0 : i32
    %c0_i32_0 = arith.constant 0 : i32
    %c0_i32_1 = arith.constant 0 : i32
    return %0, %c0_i32, %c0_i32_0 : i32, i32, i32
  }
  func.func @transform_5(%arg0: i32, %arg1: i32) -> (i32, i32, i32) {
    %0 = arith.muli %arg1, %arg0 : i32
    %c0_i32 = arith.constant 0 : i32
    %c0_i32_0 = arith.constant 0 : i32
    %c0_i32_1 = arith.constant 0 : i32
    return %0, %c0_i32, %c0_i32_0 : i32, i32, i32
  }
  func.func @transform_6(%arg0: i32, %arg1: i32) -> (i32, i32, i32) {
    %0 = arith.muli %arg1, %arg0 : i32
    %c0_i32 = arith.constant 0 : i32
    %c0_i32_0 = arith.constant 0 : i32
    %c0_i32_1 = arith.constant 0 : i32
    return %0, %c0_i32, %c0_i32_0 : i32, i32, i32
  }
}

module attributes {stable_mosaic.version = 11 : i64} {
  func.func @_image_pyr_kernel(%arg0: i32, %arg1: memref<1x3x32x128xf32, #tpu.memory_space<vmem>>, %arg2: memref<128x64xf32, #tpu.memory_space<vmem>>, %arg3: memref<1x32x128xf32, #tpu.memory_space<vmem>>, %arg4: memref<1x16x64xf32, #tpu.memory_space<vmem>>, %arg5: memref<1x8x32xf32, #tpu.memory_space<vmem>>, %arg6: memref<1x4x16xf32, #tpu.memory_space<vmem>>) attributes {dimension_semantics = [#tpu.dimension_semantics<parallel>], iteration_bounds = array<i64: 2>, scalar_prefetch = 0 : i64, scratch_operands = 0 : i64, tpu.core_type = #tpu.core_type<tc>, window_params = [{transform_indices = @transform_0, window_bounds = array<i64: 1, 3, 32, 128>}, {pipeline_mode = #tpu.pipeline_mode<synchronous>, transform_indices = @transform_1, window_bounds = array<i64: 128, 64>}, {transform_indices = @transform_2, window_bounds = array<i64: 1, 32, 128>}, {transform_indices = @transform_3, window_bounds = array<i64: 1, 16, 64>}, {transform_indices = @transform_4, window_bounds = array<i64: 1, 8, 32>}, {transform_indices = @transform_5, window_bounds = array<i64: 1, 4, 16>}]} {
    %c0 = arith.constant 0 : index
    %c0_0 = arith.constant 0 : index
    %c0_1 = arith.constant 0 : index
    %c0_2 = arith.constant 0 : index
    %0 = vector.load %arg1[%c0, %c0_0, %c0_1, %c0_2] : memref<1x3x32x128xf32, #tpu.memory_space<vmem>>, vector<1x1x32x128xf32>
    %1 = vector.shape_cast %0 : vector<1x1x32x128xf32> to vector<32x128xf32>
    %cst = arith.constant 1.47800303 : f32
    %2 = vector.broadcast %cst : f32 to vector<32x128xf32>
    %3 = arith.mulf %1, %2 : vector<32x128xf32>
    %c0_3 = arith.constant 0 : index
    %c1 = arith.constant 1 : index
    %c0_4 = arith.constant 0 : index
    %c0_5 = arith.constant 0 : index
    %4 = vector.load %arg1[%c0_3, %c1, %c0_4, %c0_5] : memref<1x3x32x128xf32, #tpu.memory_space<vmem>>, vector<1x1x32x128xf32>
    %5 = vector.shape_cast %4 : vector<1x1x32x128xf32> to vector<32x128xf32>
    %cst_6 = arith.constant 2.94383144 : f32
    %6 = vector.broadcast %cst_6 : f32 to vector<32x128xf32>
    %7 = arith.mulf %5, %6 : vector<32x128xf32>
    %8 = arith.addf %3, %7 : vector<32x128xf32>
    %c0_7 = arith.constant 0 : index
    %c2 = arith.constant 2 : index
    %c0_8 = arith.constant 0 : index
    %c0_9 = arith.constant 0 : index
    %9 = vector.load %arg1[%c0_7, %c2, %c0_8, %c0_9] : memref<1x3x32x128xf32, #tpu.memory_space<vmem>>, vector<1x1x32x128xf32>
    %10 = vector.shape_cast %9 : vector<1x1x32x128xf32> to vector<32x128xf32>
    %cst_10 = arith.constant 0.567164183 : f32
    %11 = vector.broadcast %cst_10 : f32 to vector<32x128xf32>
    %12 = arith.mulf %10, %11 : vector<32x128xf32>
    %13 = arith.addf %8, %12 : vector<32x128xf32>
    %cst_11 = arith.constant -2.39904499 : f32
    %14 = vector.broadcast %cst_11 : f32 to vector<32x128xf32>
    %15 = arith.addf %13, %14 : vector<32x128xf32>
    %c0_12 = arith.constant 0 : index
    %c0_13 = arith.constant 0 : index
    %c0_14 = arith.constant 0 : index
    %16 = vector.load %arg3[%c0_12, %c0_13, %c0_14] : memref<1x32x128xf32, #tpu.memory_space<vmem>>, vector<1x32x128xf32>
    %17 = vector.shape_cast %16 : vector<1x32x128xf32> to vector<32x128xf32>
    %18 = vector.shape_cast %15 : vector<32x128xf32> to vector<1x32x128xf32>
    tpu.vector_store %arg3[%c0_12, %c0_13, %c0_14], %18 {strides = array<i32>} : memref<1x32x128xf32, #tpu.memory_space<vmem>>, vector<1x32x128xf32>,
    %c0_i32 = arith.constant 0 : i32
    %c0_i32_15 = arith.constant 0 : i32
    %c0_i32_16 = arith.constant 0 : i32
    %19 = tpu.memref_slice %arg3[%c0_i32, %c0_i32_15, %c0_i32_16] : memref<1x32x128xf32, #tpu.memory_space<vmem>> -> memref<1x32x128xf32, #tpu.memory_space<vmem>>
    %20 = tpu.memref_squeeze %19 : memref<1x32x128xf32, #tpu.memory_space<vmem>> -> memref<32x128xf32, #tpu.memory_space<vmem>>
    %c0_17 = arith.constant 0 : index
    %c0_18 = arith.constant 0 : index
    %21 = tpu.strided_load %20[%c0_17, %c0_18] {strides = array<i32: 2, 1>} : memref<32x128xf32, #tpu.memory_space<vmem>>, vector<16x128xf32>
    %c0_i32_19 = arith.constant 0 : i32
    %c0_i32_20 = arith.constant 0 : i32
    %c0_i32_21 = arith.constant 0 : i32
    %22 = tpu.memref_slice %arg3[%c0_i32_19, %c0_i32_20, %c0_i32_21] : memref<1x32x128xf32, #tpu.memory_space<vmem>> -> memref<1x32x128xf32, #tpu.memory_space<vmem>>
    %23 = tpu.memref_squeeze %22 : memref<1x32x128xf32, #tpu.memory_space<vmem>> -> memref<32x128xf32, #tpu.memory_space<vmem>>
    %c1_22 = arith.constant 1 : index
    %c0_23 = arith.constant 0 : index
    %24 = tpu.strided_load %23[%c1_22, %c0_23] {strides = array<i32: 2, 1>} : memref<32x128xf32, #tpu.memory_space<vmem>>, vector<16x128xf32>
    %25 = arith.addf %21, %24 : vector<16x128xf32>
    %c0_24 = arith.constant 0 : index
    %c0_25 = arith.constant 0 : index
    %26 = vector.load %arg2[%c0_24, %c0_25] : memref<128x64xf32, #tpu.memory_space<vmem>>, vector<128x64xf32>
    %cst_26 = arith.constant dense<0.000000e+00> : vector<16x64xf32>
    %27 = tpu.matmul %25, %26, %cst_26 {dimension_numbers = #tpu.dot_dimension_numbers<[1], [0], [0], [1], [0, 0, 1, 1], [], []>} : vector<16x128xf32>, vector<128x64xf32>, vector<16x64xf32> -> vector<16x64xf32>
    %c0_27 = arith.constant 0 : index
    %c0_28 = arith.constant 0 : index
    %c0_29 = arith.constant 0 : index
    %28 = vector.load %arg4[%c0_27, %c0_28, %c0_29] : memref<1x16x64xf32, #tpu.memory_space<vmem>>, vector<1x16x64xf32>
    %29 = vector.shape_cast %28 : vector<1x16x64xf32> to vector<16x64xf32>
    %30 = vector.shape_cast %27 : vector<16x64xf32> to vector<1x16x64xf32>
    tpu.vector_store %arg4[%c0_27, %c0_28, %c0_29], %30 {strides = array<i32>} : memref<1x16x64xf32, #tpu.memory_space<vmem>>, vector<1x16x64xf32>,
    %c0_i32_30 = arith.constant 0 : i32
    %c0_i32_31 = arith.constant 0 : i32
    %c0_i32_32 = arith.constant 0 : i32
    %31 = tpu.memref_slice %arg4[%c0_i32_30, %c0_i32_31, %c0_i32_32] : memref<1x16x64xf32, #tpu.memory_space<vmem>> -> memref<1x16x64xf32, #tpu.memory_space<vmem>>
    %32 = tpu.memref_squeeze %31 : memref<1x16x64xf32, #tpu.memory_space<vmem>> -> memref<16x64xf32, #tpu.memory_space<vmem>>
    %c0_33 = arith.constant 0 : index
    %c0_34 = arith.constant 0 : index
    %33 = tpu.strided_load %32[%c0_33, %c0_34] {strides = array<i32: 2, 1>} : memref<16x64xf32, #tpu.memory_space<vmem>>, vector<8x64xf32>
    %c0_i32_35 = arith.constant 0 : i32
    %c0_i32_36 = arith.constant 0 : i32
    %c0_i32_37 = arith.constant 0 : i32
    %34 = tpu.memref_slice %arg4[%c0_i32_35, %c0_i32_36, %c0_i32_37] : memref<1x16x64xf32, #tpu.memory_space<vmem>> -> memref<1x16x64xf32, #tpu.memory_space<vmem>>
    %35 = tpu.memref_squeeze %34 : memref<1x16x64xf32, #tpu.memory_space<vmem>> -> memref<16x64xf32, #tpu.memory_space<vmem>>
    %c1_38 = arith.constant 1 : index
    %c0_39 = arith.constant 0 : index
    %36 = tpu.strided_load %35[%c1_38, %c0_39] {strides = array<i32: 2, 1>} : memref<16x64xf32, #tpu.memory_space<vmem>>, vector<8x64xf32>
    %37 = arith.addf %33, %36 : vector<8x64xf32>
    %c0_40 = arith.constant 0 : index
    %c0_41 = arith.constant 0 : index
    %38 = vector.load %arg2[%c0_40, %c0_41] : memref<128x64xf32, #tpu.memory_space<vmem>>, vector<64x32xf32>
    %cst_42 = arith.constant dense<0.000000e+00> : vector<8x32xf32>
    %39 = tpu.matmul %37, %38, %cst_42 {dimension_numbers = #tpu.dot_dimension_numbers<[1], [0], [0], [1], [0, 0, 1, 1], [], []>} : vector<8x64xf32>, vector<64x32xf32>, vector<8x32xf32> -> vector<8x32xf32>
    %c0_43 = arith.constant 0 : index
    %c0_44 = arith.constant 0 : index
    %c0_45 = arith.constant 0 : index
    %40 = vector.load %arg5[%c0_43, %c0_44, %c0_45] : memref<1x8x32xf32, #tpu.memory_space<vmem>>, vector<1x8x32xf32>
    %41 = vector.shape_cast %40 : vector<1x8x32xf32> to vector<8x32xf32>
    %42 = vector.shape_cast %39 : vector<8x32xf32> to vector<1x8x32xf32>
    tpu.vector_store %arg5[%c0_43, %c0_44, %c0_45], %42 {strides = array<i32>} : memref<1x8x32xf32, #tpu.memory_space<vmem>>, vector<1x8x32xf32>,
    %c0_i32_46 = arith.constant 0 : i32
    %c0_i32_47 = arith.constant 0 : i32
    %c0_i32_48 = arith.constant 0 : i32
    %43 = tpu.memref_slice %arg5[%c0_i32_46, %c0_i32_47, %c0_i32_48] : memref<1x8x32xf32, #tpu.memory_space<vmem>> -> memref<1x8x32xf32, #tpu.memory_space<vmem>>
    %44 = tpu.memref_squeeze %43 : memref<1x8x32xf32, #tpu.memory_space<vmem>> -> memref<8x32xf32, #tpu.memory_space<vmem>>
    %c0_49 = arith.constant 0 : index
    %c0_50 = arith.constant 0 : index
    %45 = tpu.strided_load %44[%c0_49, %c0_50] {strides = array<i32: 2, 1>} : memref<8x32xf32, #tpu.memory_space<vmem>>, vector<4x32xf32>
    %c0_i32_51 = arith.constant 0 : i32
    %c0_i32_52 = arith.constant 0 : i32
    %c0_i32_53 = arith.constant 0 : i32
    %46 = tpu.memref_slice %arg5[%c0_i32_51, %c0_i32_52, %c0_i32_53] : memref<1x8x32xf32, #tpu.memory_space<vmem>> -> memref<1x8x32xf32, #tpu.memory_space<vmem>>
    %47 = tpu.memref_squeeze %46 : memref<1x8x32xf32, #tpu.memory_space<vmem>> -> memref<8x32xf32, #tpu.memory_space<vmem>>
    %c1_54 = arith.constant 1 : index
    %c0_55 = arith.constant 0 : index
    %48 = tpu.strided_load %47[%c1_54, %c0_55] {strides = array<i32: 2, 1>} : memref<8x32xf32, #tpu.memory_space<vmem>>, vector<4x32xf32>
    %49 = arith.addf %45, %48 : vector<4x32xf32>
    %c0_56 = arith.constant 0 : index
    %c0_57 = arith.constant 0 : index
    %50 = vector.load %arg2[%c0_56, %c0_57] : memref<128x64xf32, #tpu.memory_space<vmem>>, vector<32x16xf32>
    %cst_58 = arith.constant dense<0.000000e+00> : vector<4x16xf32>
    %51 = tpu.matmul %49, %50, %cst_58 {dimension_numbers = #tpu.dot_dimension_numbers<[1], [0], [0], [1], [0, 0, 1, 1], [], []>} : vector<4x32xf32>, vector<32x16xf32>, vector<4x16xf32> -> vector<4x16xf32>
    %c0_59 = arith.constant 0 : index
    %c0_60 = arith.constant 0 : index
    %c0_61 = arith.constant 0 : index
    %52 = vector.load %arg6[%c0_59, %c0_60, %c0_61] : memref<1x4x16xf32, #tpu.memory_space<vmem>>, vector<1x4x16xf32>
    %53 = vector.shape_cast %52 : vector<1x4x16xf32> to vector<4x16xf32>
    %54 = vector.shape_cast %51 : vector<4x16xf32> to vector<1x4x16xf32>
    tpu.vector_store %arg6[%c0_59, %c0_60, %c0_61], %54 {strides = array<i32>} : memref<1x4x16xf32, #tpu.memory_space<vmem>>, vector<1x4x16xf32>,
    return
  }
  func.func @transform_0(%arg0: i32) -> (i32, i32, i32, i32) {
    %c0_i32 = arith.constant 0 : i32
    %c0_i32_0 = arith.constant 0 : i32
    %c0_i32_1 = arith.constant 0 : i32
    %c0_i32_2 = arith.constant 0 : i32
    return %arg0, %c0_i32, %c0_i32_0, %c0_i32_1 : i32, i32, i32, i32
  }
  func.func @transform_1(%arg0: i32) -> (i32, i32) {
    %c0_i32 = arith.constant 0 : i32
    %c0_i32_0 = arith.constant 0 : i32
    %c0_i32_1 = arith.constant 0 : i32
    return %c0_i32, %c0_i32_0 : i32, i32
  }
  func.func @transform_2(%arg0: i32) -> (i32, i32, i32) {
    %c0_i32 = arith.constant 0 : i32
    %c0_i32_0 = arith.constant 0 : i32
    %c0_i32_1 = arith.constant 0 : i32
    return %arg0, %c0_i32, %c0_i32_0 : i32, i32, i32
  }
  func.func @transform_3(%arg0: i32) -> (i32, i32, i32) {
    %c0_i32 = arith.constant 0 : i32
    %c0_i32_0 = arith.constant 0 : i32
    %c0_i32_1 = arith.constant 0 : i32
    return %arg0, %c0_i32, %c0_i32_0 : i32, i32, i32
  }
  func.func @transform_4(%arg0: i32) -> (i32, i32, i32) {
    %c0_i32 = arith.constant 0 : i32
    %c0_i32_0 = arith.constant 0 : i32
    %c0_i32_1 = arith.constant 0 : i32
    return %arg0, %c0_i32, %c0_i32_0 : i32, i32, i32
  }
  func.func @transform_5(%arg0: i32) -> (i32, i32, i32) {
    %c0_i32 = arith.constant 0 : i32
    %c0_i32_0 = arith.constant 0 : i32
    %c0_i32_1 = arith.constant 0 : i32
    return %arg0, %c0_i32, %c0_i32_0 : i32, i32, i32
  }
}

</mosaic_0001>

<llo_original>
// kernel: least_square_tracking_forward.4
$region0: #{least_square_tracking_forward.4}
  #allocation0 [shape = 'u32[]', space=smem, size = 0x4, offset = 0x4, fixed_abs, tag = 'smem constant byte address 0x4 - core index']
  #allocation1 [shape = 'u32[144,128]{1,0:T(1,128)}', space=vmem, size = 0x12000, scoped, tag = 'internal scratch']
  %s0 = inlined_call_operand.vmem [shape: f32[2,3,32,128], index: 0, kind: input, shape index: {}]
  %s1 = inlined_call_operand.vmem [shape: f32[128,64], index: 1, kind: input, shape index: {}]
  %s2 = inlined_call_operand.hbm [shape: f32[2,32,128], index: 2, kind: output, shape index: {0}]
  %s3 = inlined_call_operand.hbm [shape: f32[2,16,64], index: 3, kind: output, shape index: {1}]
  %s4 = inlined_call_operand.hbm [shape: f32[2,8,32], index: 4, kind: output, shape index: {2}]
  %s5 = inlined_call_operand.hbm [shape: f32[2,4,16], index: 5, kind: output, shape index: {3}]
  %6 = xla_tuple %s2, %s3, %s4, %s5
  %s7 = sld [smem:[#allocation0]]
  $region65: #{least_square_tracking_forward.4} parent=0
    _
  %s9 = ssub.s32 1, %s7
  %s10 = scalar_select 0, %s9, %s7
  $region1: #{least_square_tracking_forward.4} parent=0
    #allocation2 [shape = 'u8[32768]{0}', space=vmem, size = 0x8000, scoped, tag = 'output window, operand 0']
    #allocation3 [shape = 's32[2]{0}', space=sflag, size = 0x8, scoped, tag = 'scoped memory for least_square_tracking_forward.4']
    #allocation4 [shape = 'u8[16384]{0}', space=vmem, size = 0x4000, scoped, tag = 'output window, operand 1']
    #allocation5 [shape = 's32[2]{0}', space=sflag, size = 0x8, scoped, tag = 'scoped memory for least_square_tracking_forward.4']
    #allocation6 [shape = 'u8[8192]{0}', space=vmem, size = 0x2000, scoped, tag = 'output window, operand 2']
    #allocation7 [shape = 'u8[4096]{0}', space=vmem, size = 0x1000, scoped, tag = 'output window, operand 3']
    #allocation8 [shape = 's32[2]{0}', space=sflag, size = 0x8, scoped, tag = 'scoped memory for least_square_tracking_forward.4']
    %11 = vsyncpa [#allocation3], 0
    %s12 = scalar_lea.sflag [#allocation3], 1
    %13 = vsyncpa %s12, 0
    %14 = vsyncpa [#allocation5], 0
    %s15 = scalar_lea.sflag [#allocation5], 1
    %16 = vsyncpa %s15, 0
    %17 = vsyncpa [#allocation8], 0
    %s18 = scalar_lea.sflag [#allocation8], 1
    %19 = vsyncpa %s18, 0
    loop: start=0, step=1, limit=4
    $region2: #{least_square_tracking_forward.4} parent=1 // loop_pre_header
      _
    $region3: #{least_square_tracking_forward.4} parent=1 // loop_header
      %s21 = sphi 0, %s25
      %p22 = scmp.ge.s32.totalorder %s21, 4
      %s31 = sphi 0, %s33
      %s34 = sphi 0, %s31
      %s35 = sphi 0, %s34
      %s51 = sphi 0, %s35
      %s55 = sphi 0, %s55
      %s57 = sphi 0, %s55
      %s58 = sphi 0, %s57
      %s72 = sphi 0, %s58
      %s78 = sphi 0, %s80
      %s81 = sphi 0, %s78
      %s82 = sphi 0, %s81
      %s98 = sphi 0, %s82
      %s104 = sphi 0, %s106
      %s107 = sphi 0, %s104
      %s108 = sphi 0, %s107
      %s124 = sphi 0, %s108
      %s130 = sphi 0, %s132
      %s133 = sphi 0, %s130
      %s134 = sphi 0, %s133
      %s150 = sphi 0, %s134
      %s156 = sphi 0, %s158
      %s159 = sphi 0, %s156
      %s160 = sphi 0, %s159
      %s176 = sphi 0, %s160
    $region4: #{least_square_tracking_forward.4} parent=1 // loop_header_branch
      %24 = sbr.rel (%p22) target = $region8
    $region5: #{least_square_tracking_forward.4} parent=1 // loop_body
      %s26 = ssub.s32 %s21, 1
      %s27 = ssub.s32 %s21, 2
      %s28 = sadd.s32 %s21, 1
      %s29 = ssub.s32 %s21, %s28
      %p30 = scmp.eq.s32.totalorder %s29, 0
      %s32 = sadd.s32 %s31, 1
      %s33 = scalar_select %p30, %s31, %s32
      %p36 = pneg %p30
      %p37 = scmp.eq.s32.totalorder %s21, 1
      %p38 = por %p36, %p37
      %p39 = scmp.ne.s32.totalorder %s31, %s34
      %p40 = scmp.eq.s32.totalorder %s21, 0
      %p41 = por %p39, %p40
      %p42 = scmp.ne.s32.totalorder %s31, %s34
      %p43 = scmp.eq.s32.totalorder %s26, 1
      %p44 = por %p42, %p43
      %p45 = scmp.ne.s32.totalorder %s34, %s35
      %p46 = scmp.eq.s32.totalorder %s26, 0
      %p47 = por %p45, %p46
      %p48 = scmp.ne.s32.totalorder %s34, %s35
      %p49 = scmp.eq.s32.totalorder %s27, 1
      %p50 = por %p48, %p49
      %p52 = scmp.ne.s32.totalorder %s35, %s51
      %p53 = scmp.eq.s32.totalorder %s27, 0
      %p54 = por %p52, %p53
      %s56 = sadd.s32 %s55, 1
      %p59 = scmp.eq.s32.totalorder %s21, 1
      %p60 = scmp.ne.s32.totalorder %s55, %s57
      %p61 = scmp.eq.s32.totalorder %s21, 0
      %p62 = por %p60, %p61
      %p63 = scmp.ne.s32.totalorder %s55, %s57
      %p64 = scmp.eq.s32.totalorder %s26, 1
      %p65 = por %p63, %p64
      %p66 = scmp.ne.s32.totalorder %s57, %s58
      %p67 = scmp.eq.s32.totalorder %s26, 0
      %p68 = por %p66, %p67
      %p69 = scmp.ne.s32.totalorder %s57, %s58
      %p70 = scmp.eq.s32.totalorder %s27, 1
      %p71 = por %p69, %p70
      %p73 = scmp.ne.s32.totalorder %s58, %s72
      %p74 = scmp.eq.s32.totalorder %s27, 0
      %p75 = por %p73, %p74
      %s76 = ssub.s32 %s21, %s28
      %p77 = scmp.eq.s32.totalorder %s76, 0
      %s79 = sadd.s32 %s78, 1
      %s80 = scalar_select %p77, %s78, %s79
      %p83 = pneg %p77
      %p84 = scmp.eq.s32.totalorder %s21, 1
      %p85 = por %p83, %p84
      %p86 = scmp.ne.s32.totalorder %s78, %s81
      %p87 = scmp.eq.s32.totalorder %s21, 0
      %p88 = por %p86, %p87
      %p89 = scmp.ne.s32.totalorder %s78, %s81
      %p90 = scmp.eq.s32.totalorder %s26, 1
      %p91 = por %p89, %p90
      %p92 = scmp.ne.s32.totalorder %s81, %s82
      %p93 = scmp.eq.s32.totalorder %s26, 0
      %p94 = por %p92, %p93
      %p95 = scmp.ne.s32.totalorder %s81, %s82
      %p96 = scmp.eq.s32.totalorder %s27, 1
      %p97 = por %p95, %p96
      %p99 = scmp.ne.s32.totalorder %s82, %s98
      %p100 = scmp.eq.s32.totalorder %s27, 0
      %p101 = por %p99, %p100
      %s102 = ssub.s32 %s21, %s28
      %p103 = scmp.eq.s32.totalorder %s102, 0
      %s105 = sadd.s32 %s104, 1
      %s106 = scalar_select %p103, %s104, %s105
      %p109 = pneg %p103
      %p110 = scmp.eq.s32.totalorder %s21, 1
      %p111 = por %p109, %p110
      %p112 = scmp.ne.s32.totalorder %s104, %s107
      %p113 = scmp.eq.s32.totalorder %s21, 0
      %p114 = por %p112, %p113
      %p115 = scmp.ne.s32.totalorder %s104, %s107
      %p116 = scmp.eq.s32.totalorder %s26, 1
      %p117 = por %p115, %p116
      %p118 = scmp.ne.s32.totalorder %s107, %s108
      %p119 = scmp.eq.s32.totalorder %s26, 0
      %p120 = por %p118, %p119
      %p121 = scmp.ne.s32.totalorder %s107, %s108
      %p122 = scmp.eq.s32.totalorder %s27, 1
      %p123 = por %p121, %p122
      %p125 = scmp.ne.s32.totalorder %s108, %s124
      %p126 = scmp.eq.s32.totalorder %s27, 0
      %p127 = por %p125, %p126
      %s128 = ssub.s32 %s21, %s28
      %p129 = scmp.eq.s32.totalorder %s128, 0
      %s131 = sadd.s32 %s130, 1
      %s132 = scalar_select %p129, %s130, %s131
      %p135 = pneg %p129
      %p136 = scmp.eq.s32.totalorder %s21, 1
      %p137 = por %p135, %p136
      %p138 = scmp.ne.s32.totalorder %s130, %s133
      %p139 = scmp.eq.s32.totalorder %s21, 0
      %p140 = por %p138, %p139
      %p141 = scmp.ne.s32.totalorder %s130, %s133
      %p142 = scmp.eq.s32.totalorder %s26, 1
      %p143 = por %p141, %p142
      %p144 = scmp.ne.s32.totalorder %s133, %s134
      %p145 = scmp.eq.s32.totalorder %s26, 0
      %p146 = por %p144, %p145
      %p147 = scmp.ne.s32.totalorder %s133, %s134
      %p148 = scmp.eq.s32.totalorder %s27, 1
      %p149 = por %p147, %p148
      %p151 = scmp.ne.s32.totalorder %s134, %s150
      %p152 = scmp.eq.s32.totalorder %s27, 0
      %p153 = por %p151, %p152
      %s154 = ssub.s32 %s21, %s28
      %p155 = scmp.eq.s32.totalorder %s154, 0
      %s157 = sadd.s32 %s156, 1
      %s158 = scalar_select %p155, %s156, %s157
      %p161 = pneg %p155
      %p162 = scmp.eq.s32.totalorder %s21, 1
      %p163 = por %p161, %p162
      %p164 = scmp.ne.s32.totalorder %s156, %s159
      %p165 = scmp.eq.s32.totalorder %s21, 0
      %p166 = por %p164, %p165
      %p167 = scmp.ne.s32.totalorder %s156, %s159
      %p168 = scmp.eq.s32.totalorder %s26, 1
      %p169 = por %p167, %p168
      %p170 = scmp.ne.s32.totalorder %s159, %s160
      %p171 = scmp.eq.s32.totalorder %s26, 0
      %p172 = por %p170, %p171
      %p173 = scmp.ne.s32.totalorder %s159, %s160
      %p174 = scmp.eq.s32.totalorder %s27, 1
      %p175 = por %p173, %p174
      %p177 = scmp.ne.s32.totalorder %s160, %s176
      %p178 = scmp.eq.s32.totalorder %s27, 0
      %p179 = por %p177, %p178
      %p180 = scmp.le.s32.totalorder 1, %s21
      %p181 = scmp.lt.s32.totalorder %s21, 3
      %p182 = pnand %p180, %p181
      %p183 = pneg %p182
      // Predicated region
      $region9: #{least_square_tracking_forward.4} parent=5 // pred_check
        _
      $region10: #{least_square_tracking_forward.4} parent=5 // pred_check_branch
        %185 = sbr.rel (%p182) target = $region12
      $region11: #{least_square_tracking_forward.4} parent=5 // pred_region
        %s186 = ssub.s32 %s21, 1
        // Predicated region
        $region13: #{least_square_tracking_forward.4} parent=11 // pred_check
          %p187 = pneg %p68
        $region14: #{least_square_tracking_forward.4} parent=11 // pred_check_branch
          %189 = sbr.rel (%p187) target = $region16
        $region15: #{least_square_tracking_forward.4} parent=11 // pred_region
          _
        $region16: #{least_square_tracking_forward.4} parent=11 // pred_fallthru
          _
      $region12: #{least_square_tracking_forward.4} parent=5 // pred_fallthru
        _
      %p190 = scmp.lt.s32.totalorder %s21, 2
      // Predicated region
      $region17: #{least_square_tracking_forward.4} parent=5 // pred_check
        %p191 = pneg %p190
      $region18: #{least_square_tracking_forward.4} parent=5 // pred_check_branch
        %193 = sbr.rel (%p191) target = $region20
      $region19: #{least_square_tracking_forward.4} parent=5 // pred_region
        // Predicated region
        $region21: #{least_square_tracking_forward.4} parent=19 // pred_check
          %p194 = pneg %p41
        $region22: #{least_square_tracking_forward.4} parent=19 // pred_check_branch
          %196 = sbr.rel (%p194) target = $region24
        $region23: #{least_square_tracking_forward.4} parent=19 // pred_region
          %p197 = scmp.lt.s32.totalorder %s21, 1
          %s198 = scalar_select %p197, %s21, 1
          %s199 = smul.addr %s198, 12
          %s200 = smul.addr %s199, 8
          %s201 = scalar_lea.vmem %s0, %s200
        $region24: #{least_square_tracking_forward.4} parent=19 // pred_fallthru
          _
      $region20: #{least_square_tracking_forward.4} parent=5 // pred_fallthru
        _
      %p202 = scmp.le.s32.totalorder 1, %s21
      %p203 = scmp.lt.s32.totalorder %s21, 3
      %p204 = pnand %p202, %p203
      %p205 = pneg %p204
      // Predicated region
      $region25: #{least_square_tracking_forward.4} parent=5 // pred_check
        _
      $region26: #{least_square_tracking_forward.4} parent=5 // pred_check_branch
        %207 = sbr.rel (%p204) target = $region28
      $region27: #{least_square_tracking_forward.4} parent=5 // pred_region
        %s208 = ssub.s32 %s21, 1
        %p209 = scmp.lt.s32.totalorder %s26, 1
        %s210 = scalar_select %p209, %s26, 1
        %s211 = smul.addr %s210, 12
        %s212 = smul.addr %s211, 8
        %s213 = scalar_lea.vmem %s0, %s212
        %p214 = pneg %p47
        %p215 = pneg %p44
        %p216 = pneg %p68
        %p217 = pneg %p65
        %p218 = pneg %p94
        %p219 = pneg %p91
        %s220 = sand.u32 %s81, 1
        %s221 = scalar_lea.sflag [#allocation3], %s220
        %s222 = sand.u32 %s81, 1
        %s223 = smul.addr %s222, 32
        %s224 = scalar_lea.vmem [#allocation2], %s223
        %p225 = pneg %p120
        %p226 = pneg %p117
        %s227 = sand.u32 %s26, 1
        %s228 = scalar_lea.sflag [#allocation5], %s227
        %s229 = sand.u32 %s107, 1
        %s230 = smul.addr %s229, 16
        %s231 = scalar_lea.vmem [#allocation4], %s230
        %p232 = pneg %p146
        %p233 = pneg %p143
        %s234 = sand.u32 %s26, 1
        %s235 = scalar_lea.sflag [#allocation5], %s234
        %s236 = sand.u32 %s133, 1
        %s237 = smul.addr %s236, 8
        %s238 = scalar_lea.vmem [#allocation6], %s237
        %p239 = pneg %p172
        %p240 = pneg %p169
        %s241 = sand.u32 %s159, 1
        %s242 = scalar_lea.sflag [#allocation8], %s241
        %s243 = sand.u32 %s159, 1
        %s244 = smul.addr %s243, 4
        %s245 = scalar_lea.vmem [#allocation7], %s244
        %p246 = scmp.lt.s32.totalorder %s26, 1
        %s247 = scalar_select %p246, %s26, 1
        %s248 = smul.addr %s247, 12
        %s249 = smul.addr %s248, 8
        %s250 = scalar_lea.vmem %s0, %s249
        %v251 = vld [vmem:[%s250] sm:$0xff]
        %v252 = vld [vmem:[%s250 + $0x8] sm:$0xff]
        %v253 = vld [vmem:[%s250 + $0x10] sm:$0xff]
        %v254 = vld [vmem:[%s250 + $0x18] sm:$0xff]
        %v255 = vmul.f32 %v251, 1.478003
        %v256 = vmul.f32 %v252, 1.478003
        %v257 = vmul.f32 %v253, 1.478003
        %v258 = vmul.f32 %v254, 1.478003
        %s259 = scalar_lea.vmem %s250, 32
        %v260 = vld [vmem:[%s259] sm:$0xff]
        %v261 = vld [vmem:[%s259 + $0x8] sm:$0xff]
        %v262 = vld [vmem:[%s259 + $0x10] sm:$0xff]
        %v263 = vld [vmem:[%s259 + $0x18] sm:$0xff]
        %v264 = vmul.f32 %v260, 2.9438314
        %v265 = vmul.f32 %v261, 2.9438314
        %v266 = vmul.f32 %v262, 2.9438314
        %v267 = vmul.f32 %v263, 2.9438314
        %v268 = vadd.f32 %v255, %v264
        %v269 = vadd.f32 %v256, %v265
        %v270 = vadd.f32 %v257, %v266
        %v271 = vadd.f32 %v258, %v267
        %s272 = scalar_lea.vmem %s250, 64
        %v273 = vld [vmem:[%s272] sm:$0xff]
        %v274 = vld [vmem:[%s272 + $0x8] sm:$0xff]
        %v275 = vld [vmem:[%s272 + $0x10] sm:$0xff]
        %v276 = vld [vmem:[%s272 + $0x18] sm:$0xff]
        %v277 = vmul.f32 %v273, 0.5671642
        %v278 = vmul.f32 %v274, 0.5671642
        %v279 = vmul.f32 %v275, 0.5671642
        %v280 = vmul.f32 %v276, 0.5671642
        %v281 = vadd.f32 %v268, %v277
        %v282 = vadd.f32 %v269, %v278
        %v283 = vadd.f32 %v270, %v279
        %v284 = vadd.f32 %v271, %v280
        %v285 = vadd.f32 %v281, -2.399045
        %v286 = vadd.f32 %v282, -2.399045
        %v287 = vadd.f32 %v283, -2.399045
        %v288 = vadd.f32 %v284, -2.399045
        %289 = vst [vmem:[%s224] sm:$0xff] %v285
        %290 = vst [vmem:[%s224 + $0x8] sm:$0xff] %v286
        %291 = vst [vmem:[%s224 + $0x10] sm:$0xff] %v287
        %292 = vst [vmem:[%s224 + $0x18] sm:$0xff] %v288
        %v293 = vld [vmem:[%s224] ss:$2 sm:$0xff]
        %s294 = scalar_lea.vmem %s224, 16 [#allocation2]
        %v295 = vld [vmem:[%s294] ss:$2 sm:$0xff]
        %s296 = scalar_lea.vmem %s224, 1 [#allocation2]
        %v297 = vld [vmem:[%s296] ss:$2 sm:$0xff]
        %s298 = scalar_lea.vmem %s224, 17 [#allocation2]
        %v299 = vld [vmem:[%s298] ss:$2 sm:$0xff]
        %v300 = vadd.f32 %v293, %v297
        %v301 = vadd.f32 %v295, %v299
        %v302 = vld [vmem:[%s1] sm:$0xff]
        %v303 = vld [vmem:[%s1 + $0x8] sm:$0xff]
        %v304 = vld [vmem:[%s1 + $0x10] sm:$0xff]
        %v305 = vld [vmem:[%s1 + $0x18] sm:$0xff]
        %v306 = vld [vmem:[%s1 + $0x20] sm:$0xff]
        %v307 = vld [vmem:[%s1 + $0x28] sm:$0xff]
        %v308 = vld [vmem:[%s1 + $0x30] sm:$0xff]
        %v309 = vld [vmem:[%s1 + $0x38] sm:$0xff]
        %v310 = vld [vmem:[%s1 + $0x40] sm:$0xff]
        %v311 = vld [vmem:[%s1 + $0x48] sm:$0xff]
        %v312 = vld [vmem:[%s1 + $0x50] sm:$0xff]
        %v313 = vld [vmem:[%s1 + $0x58] sm:$0xff]
        %v314 = vld [vmem:[%s1 + $0x60] sm:$0xff]
        %v315 = vld [vmem:[%s1 + $0x68] sm:$0xff]
        %v316 = vld [vmem:[%s1 + $0x70] sm:$0xff]
        %v317 = vld [vmem:[%s1 + $0x78] sm:$0xff]
        %318 = vmatprep.subr.mxu0 0.0
        %319 = vmatpush1.msra.mxu0 %v302
        %320 = vmatprep.subr.mxu0 0.0
        %321 = vmatpush1.msra.mxu0 %v303
        %322 = vmatprep.subr.mxu0 0.0
        %323 = vmatpush1.msra.mxu0 %v304
        %324 = vmatprep.subr.mxu0 0.0
        %325 = vmatpush1.msra.mxu0 %v305
        %326 = vmatprep.subr.mxu0 0.0
        %327 = vmatpush1.msra.mxu0 %v306
        %328 = vmatprep.subr.mxu0 0.0
        %329 = vmatpush1.msra.mxu0 %v307
        %330 = vmatprep.subr.mxu0 0.0
        %331 = vmatpush1.msra.mxu0 %v308
        %332 = vmatprep.subr.mxu0 0.0
        %333 = vmatpush1.msra.mxu0 %v309
        %334 = vmatprep.subr.mxu0 0.0
        %335 = vmatpush1.msra.mxu0 %v310
        %336 = vmatprep.subr.mxu0 0.0
        %337 = vmatpush1.msra.mxu0 %v311
        %338 = vmatprep.subr.mxu0 0.0
        %339 = vmatpush1.msra.mxu0 %v312
        %340 = vmatprep.subr.mxu0 0.0
        %341 = vmatpush1.msra.mxu0 %v313
        %342 = vmatprep.subr.mxu0 0.0
        %343 = vmatpush1.msra.mxu0 %v314
        %344 = vmatprep.subr.mxu0 0.0
        %345 = vmatpush1.msra.mxu0 %v315
        %346 = vmatprep.subr.mxu0 0.0
        %347 = vmatpush1.msra.mxu0 %v316
        %348 = vmatprep.subr.mxu0 0.0
        %349 = vmatpush1.msra.mxu0 %v317
        %350 = vmatprep.subr.mxu0 0.0
        %351 = vmatpush1.msra.mxu0 0.0
        %352 = vmatprep.subr.mxu0 0.0
        %353 = vmatpush1.msra.mxu0 0.0
        %354 = vmatprep.subr.mxu0 0.0
        %355 = vmatpush1.msra.mxu0 0.0
        %356 = vmatprep.subr.mxu0 0.0
        %357 = vmatpush1.msra.mxu0 0.0
        %358 = vmatprep.subr.mxu0 0.0
        %359 = vmatpush1.msra.mxu0 0.0
        %360 = vmatprep.subr.mxu0 0.0
        %361 = vmatpush1.msra.mxu0 0.0
        %362 = vmatprep.subr.mxu0 0.0
        %363 = vmatpush1.msra.mxu0 0.0
        %364 = vmatprep.subr.mxu0 0.0
        %365 = vmatpush1.msra.mxu0 0.0
        %366 = vmatprep.subr.mxu0 0.0
        %367 = vmatpush1.msra.mxu0 0.0
        %368 = vmatprep.subr.mxu0 0.0
        %369 = vmatpush1.msra.mxu0 0.0
        %370 = vmatprep.subr.mxu0 0.0
        %371 = vmatpush1.msra.mxu0 0.0
        %372 = vmatprep.subr.mxu0 0.0
        %373 = vmatpush1.msra.mxu0 0.0
        %374 = vmatprep.subr.mxu0 0.0
        %375 = vmatpush1.msra.mxu0 0.0
        %376 = vmatprep.subr.mxu0 0.0
        %377 = vmatpush1.msra.mxu0 0.0
        %378 = vmatprep.subr.mxu0 0.0
        %379 = vmatpush1.msra.mxu0 0.0
        %380 = vmatprep.subr.mxu0 0.0
        %381 = vmatpush1.msra.mxu0 0.0
        %382 = vmatprep.mubr.f32.mxu0 0.0
        %383 = vmatmul.mubr.f32.gmra.mrb[0].mxu0 %v300
        %v384 = vpop.f32.mrb[0].mxu0
        %v385 = vadd.f32 0.0, %v384
        %v386 = vpop.f32.mrb[0].mxu0
        %387 = vmatprep.mubr.f32.mxu0 0.0
        %388 = vmatmul.mubr.f32.gmra.mrb[0].mxu0 %v301
        %v389 = vpop.f32.mrb[0].mxu0
        %v390 = vadd.f32 0.0, %v389
        %v391 = vpop.f32.mrb[0].mxu0
        %392 = vdwg.mxu0
        %vm393 = vcmask 523264
        %394 = vst.msk [vmem:[%s231] sm:$0xff] %vm393, %v385
        %395 = vst.msk [vmem:[%s231 + $0x8] sm:$0xff] %vm393, %v390
        %v396 = vld [vmem:[%s231] ss:$2 sm:$0xff]
        %s397 = scalar_lea.vmem %s231, 1 [#allocation4]
        %v398 = vld [vmem:[%s397] ss:$2 sm:$0xff]
        %v399 = vadd.f32 %v396, %v398
        %v400 = vld [vmem:[%s1] sm:$0xff]
        %v401 = vld [vmem:[%s1 + $0x8] sm:$0xff]
        %v402 = vld [vmem:[%s1 + $0x10] sm:$0xff]
        %v403 = vld [vmem:[%s1 + $0x18] sm:$0xff]
        %v404 = vld [vmem:[%s1 + $0x20] sm:$0xff]
        %v405 = vld [vmem:[%s1 + $0x28] sm:$0xff]
        %v406 = vld [vmem:[%s1 + $0x30] sm:$0xff]
        %v407 = vld [vmem:[%s1 + $0x38] sm:$0xff]
        %v409 = vsel %vm393, %v399, 0
        %411 = vmatprep.subr.mxu0 0.0
        %412 = vmatpush1.msra.mxu0 %v400
        %413 = vmatprep.subr.mxu0 0.0
        %414 = vmatpush1.msra.mxu0 %v401
        %415 = vmatprep.subr.mxu0 0.0
        %416 = vmatpush1.msra.mxu0 %v402
        %417 = vmatprep.subr.mxu0 0.0
        %418 = vmatpush1.msra.mxu0 %v403
        %419 = vmatprep.subr.mxu0 0.0
        %420 = vmatpush1.msra.mxu0 %v404
        %421 = vmatprep.subr.mxu0 0.0
        %422 = vmatpush1.msra.mxu0 %v405
        %423 = vmatprep.subr.mxu0 0.0
        %424 = vmatpush1.msra.mxu0 %v406
        %425 = vmatprep.subr.mxu0 0.0
        %426 = vmatpush1.msra.mxu0 %v407
        %427 = vmatprep.subr.mxu0 0.0
        %428 = vmatpush1.msra.mxu0 0.0
        %429 = vmatprep.subr.mxu0 0.0
        %430 = vmatpush1.msra.mxu0 0.0
        %431 = vmatprep.subr.mxu0 0.0
        %432 = vmatpush1.msra.mxu0 0.0
        %433 = vmatprep.subr.mxu0 0.0
        %434 = vmatpush1.msra.mxu0 0.0
        %435 = vmatprep.subr.mxu0 0.0
        %436 = vmatpush1.msra.mxu0 0.0
        %437 = vmatprep.subr.mxu0 0.0
        %438 = vmatpush1.msra.mxu0 0.0
        %439 = vmatprep.subr.mxu0 0.0
        %440 = vmatpush1.msra.mxu0 0.0
        %441 = vmatprep.subr.mxu0 0.0
        %442 = vmatpush1.msra.mxu0 0.0
        %443 = vmatprep.subr.mxu0 0.0
        %444 = vmatpush1.msra.mxu0 0.0
        %445 = vmatprep.subr.mxu0 0.0
        %446 = vmatpush1.msra.mxu0 0.0
        %447 = vmatprep.subr.mxu0 0.0
        %448 = vmatpush1.msra.mxu0 0.0
        %449 = vmatprep.subr.mxu0 0.0
        %450 = vmatpush1.msra.mxu0 0.0
        %451 = vmatprep.subr.mxu0 0.0
        %452 = vmatpush1.msra.mxu0 0.0
        %453 = vmatprep.subr.mxu0 0.0
        %454 = vmatpush1.msra.mxu0 0.0
        %455 = vmatprep.subr.mxu0 0.0
        %456 = vmatpush1.msra.mxu0 0.0
        %457 = vmatprep.subr.mxu0 0.0
        %458 = vmatpush1.msra.mxu0 0.0
        %459 = vmatprep.subr.mxu0 0.0
        %460 = vmatpush1.msra.mxu0 0.0
        %461 = vmatprep.subr.mxu0 0.0
        %462 = vmatpush1.msra.mxu0 0.0
        %463 = vmatprep.subr.mxu0 0.0
        %464 = vmatpush1.msra.mxu0 0.0
        %465 = vmatprep.subr.mxu0 0.0
        %466 = vmatpush1.msra.mxu0 0.0
        %467 = vmatprep.subr.mxu0 0.0
        %468 = vmatpush1.msra.mxu0 0.0
        %469 = vmatprep.subr.mxu0 0.0
        %470 = vmatpush1.msra.mxu0 0.0
        %471 = vmatprep.subr.mxu0 0.0
        %472 = vmatpush1.msra.mxu0 0.0
        %473 = vmatprep.subr.mxu0 0.0
        %474 = vmatpush1.msra.mxu0 0.0
        %475 = vmatprep.mubr.f32.mxu0 0.0
        %476 = vmatmul.mubr.f32.gmra.mrb[0].mxu0 %v409
        %v477 = vpop.f32.mrb[0].mxu0
        %v478 = vadd.f32 0.0, %v477
        %v479 = vpop.f32.mrb[0].mxu0
        %480 = vdwg.mxu0
        %vm481 = vcmask 261120
        %482 = vst.msk [vmem:[%s238] sm:$0xff] %vm481, %v478
        %v483 = vld [vmem:[%s238] ss:$2 sm:$0xf]
        %s484 = scalar_lea.vmem %s238, 1 [#allocation6]
        %v485 = vld [vmem:[%s484] ss:$2 sm:$0xf]
        %v486 = vadd.f32 %v483, %v485
        %v487 = vld [vmem:[%s1] sm:$0xff]
        %v488 = vld [vmem:[%s1 + $0x8] sm:$0xff]
        %v489 = vld [vmem:[%s1 + $0x10] sm:$0xff]
        %v490 = vld [vmem:[%s1 + $0x18] sm:$0xff]
        %v492 = vsel %vm481, %v486, 0
        %494 = vmatprep.subr.mxu0 0.0
        %495 = vmatpush1.msra.mxu0 %v487
        %496 = vmatprep.subr.mxu0 0.0
        %497 = vmatpush1.msra.mxu0 %v488
        %498 = vmatprep.subr.mxu0 0.0
        %499 = vmatpush1.msra.mxu0 %v489
        %500 = vmatprep.subr.mxu0 0.0
        %501 = vmatpush1.msra.mxu0 %v490
        %502 = vmatprep.subr.mxu0 0.0
        %503 = vmatpush1.msra.mxu0 0.0
        %504 = vmatprep.subr.mxu0 0.0
        %505 = vmatpush1.msra.mxu0 0.0
        %506 = vmatprep.subr.mxu0 0.0
        %507 = vmatpush1.msra.mxu0 0.0
        %508 = vmatprep.subr.mxu0 0.0
        %509 = vmatpush1.msra.mxu0 0.0
        %510 = vmatprep.subr.mxu0 0.0
        %511 = vmatpush1.msra.mxu0 0.0
        %512 = vmatprep.subr.mxu0 0.0
        %513 = vmatpush1.msra.mxu0 0.0
        %514 = vmatprep.subr.mxu0 0.0
        %515 = vmatpush1.msra.mxu0 0.0
        %516 = vmatprep.subr.mxu0 0.0
        %517 = vmatpush1.msra.mxu0 0.0
        %518 = vmatprep.subr.mxu0 0.0
        %519 = vmatpush1.msra.mxu0 0.0
        %520 = vmatprep.subr.mxu0 0.0
        %521 = vmatpush1.msra.mxu0 0.0
        %522 = vmatprep.subr.mxu0 0.0
        %523 = vmatpush1.msra.mxu0 0.0
        %524 = vmatprep.subr.mxu0 0.0
        %525 = vmatpush1.msra.mxu0 0.0
        %526 = vmatprep.subr.mxu0 0.0
        %527 = vmatpush1.msra.mxu0 0.0
        %528 = vmatprep.subr.mxu0 0.0
        %529 = vmatpush1.msra.mxu0 0.0
        %530 = vmatprep.subr.mxu0 0.0
        %531 = vmatpush1.msra.mxu0 0.0
        %532 = vmatprep.subr.mxu0 0.0
        %533 = vmatpush1.msra.mxu0 0.0
        %534 = vmatprep.subr.mxu0 0.0
        %535 = vmatpush1.msra.mxu0 0.0
        %536 = vmatprep.subr.mxu0 0.0
        %537 = vmatpush1.msra.mxu0 0.0
        %538 = vmatprep.subr.mxu0 0.0
        %539 = vmatpush1.msra.mxu0 0.0
        %540 = vmatprep.subr.mxu0 0.0
        %541 = vmatpush1.msra.mxu0 0.0
        %542 = vmatprep.subr.mxu0 0.0
        %543 = vmatpush1.msra.mxu0 0.0
        %544 = vmatprep.subr.mxu0 0.0
        %545 = vmatpush1.msra.mxu0 0.0
        %546 = vmatprep.subr.mxu0 0.0
        %547 = vmatpush1.msra.mxu0 0.0
        %548 = vmatprep.subr.mxu0 0.0
        %549 = vmatpush1.msra.mxu0 0.0
        %550 = vmatprep.subr.mxu0 0.0
        %551 = vmatpush1.msra.mxu0 0.0
        %552 = vmatprep.subr.mxu0 0.0
        %553 = vmatpush1.msra.mxu0 0.0
        %554 = vmatprep.subr.mxu0 0.0
        %555 = vmatpush1.msra.mxu0 0.0
        %556 = vmatprep.subr.mxu0 0.0
        %557 = vmatpush1.msra.mxu0 0.0
        %558 = vmatprep.mubr.f32.mxu0 0.0
        %559 = vmatmul.mubr.f32.gmra.mrb[0].mxu0 %v492
        %v560 = vpop.f32.mrb[0].mxu0
        %v561 = vadd.f32 0.0, %v560
        %v562 = vpop.f32.mrb[0].mxu0
        %563 = vdwg.mxu0
        %vm564 = vcmask 125952
        %565 = vst.msk [vmem:[%s245] sm:$0xf] %vm564, %v561
        %s566 = sand.u32 %s81, 1
        %s567 = scalar_lea.sflag [#allocation3], %s566
        %s568 = sand.u32 %s81, 1
        %s569 = smul.addr %s568, 32
        %s570 = scalar_lea.vmem [#allocation2], %s569
        %s571 = sand.u32 %s26, 1
        %s572 = scalar_lea.sflag [#allocation5], %s571
        %s573 = sand.u32 %s107, 1
        %s574 = smul.addr %s573, 16
        %s575 = scalar_lea.vmem [#allocation4], %s574
        %s576 = sand.u32 %s26, 1
        %s577 = scalar_lea.sflag [#allocation5], %s576
        %s578 = sand.u32 %s133, 1
        %s579 = smul.addr %s578, 8
        %s580 = scalar_lea.vmem [#allocation6], %s579
        %s581 = sand.u32 %s159, 1
        %s582 = scalar_lea.sflag [#allocation8], %s581
        %s583 = sand.u32 %s159, 1
        %s584 = smul.addr %s583, 4
        %s585 = scalar_lea.vmem [#allocation7], %s584
        // Predicated region
        $region29: #{least_square_tracking_forward.4} parent=27 // pred_check
          %p586 = pneg %p91
        $region30: #{least_square_tracking_forward.4} parent=27 // pred_check_branch
          %588 = sbr.rel (%p586) target = $region32
        $region31: #{least_square_tracking_forward.4} parent=27 // pred_region
          %s590 = ssub.s32 512, 512
          %591 = vsyncadd %s567, %s590
          %s592 = smul.addr %s26, 4
          %s593 = smul.addr %s592, 128
          %s594 = scalar_lea.hbm %s2, %s593
          %s595 = sshll.u32 %s570, 4
          %s596 = int_to_ptr.vmem [resolvable:$true] %s595
          %601 = dma.vmem_to_hbm [thread:$0]  %s596, 512, %s594, %s567, 128, 128, 8
        $region32: #{least_square_tracking_forward.4} parent=27 // pred_fallthru
          _
        // Predicated region
        $region33: #{least_square_tracking_forward.4} parent=27 // pred_check
          %p602 = pneg %p117
        $region34: #{least_square_tracking_forward.4} parent=27 // pred_check_branch
          %604 = sbr.rel (%p602) target = $region36
        $region35: #{least_square_tracking_forward.4} parent=27 // pred_region
          %s606 = ssub.s32 256, 256
          %607 = vsyncadd %s572, %s606
          %s608 = smul.addr %s26, 2
          %s609 = smul.addr %s608, 128
          %s610 = scalar_lea.hbm %s3, %s609
          %s611 = sshll.u32 %s575, 4
          %s612 = int_to_ptr.vmem [resolvable:$true] %s611
          %617 = dma.vmem_to_hbm [thread:$0]  %s612, 256, %s610, %s572, 128, 128, 8
        $region36: #{least_square_tracking_forward.4} parent=27 // pred_fallthru
          _
        // Predicated region
        $region37: #{least_square_tracking_forward.4} parent=27 // pred_check
          %p618 = pneg %p143
        $region38: #{least_square_tracking_forward.4} parent=27 // pred_check_branch
          %620 = sbr.rel (%p618) target = $region40
        $region39: #{least_square_tracking_forward.4} parent=27 // pred_region
          %s622 = ssub.s32 128, 128
          %623 = vsyncadd %s577, %s622
          %s624 = smul.addr %s26, 128
          %s625 = scalar_lea.hbm %s4, %s624
          %s627 = sshll.u32 %s580, 4
          %s628 = int_to_ptr.vmem [resolvable:$true] %s627
          %630 = dma.vmem_to_hbm [thread:$0]  %s628, 128, %s625, %s577
        $region40: #{least_square_tracking_forward.4} parent=27 // pred_fallthru
          _
        // Predicated region
        $region41: #{least_square_tracking_forward.4} parent=27 // pred_check
          %p631 = pneg %p169
        $region42: #{least_square_tracking_forward.4} parent=27 // pred_check_branch
          %633 = sbr.rel (%p631) target = $region44
        $region43: #{least_square_tracking_forward.4} parent=27 // pred_region
          %s635 = ssub.s32 64, 64
          %636 = vsyncadd %s582, %s635
          %s637 = smul.addr %s26, 64
          %s638 = scalar_lea.hbm %s5, %s637
          %s640 = sshll.u32 %s585, 4
          %s641 = int_to_ptr.vmem [resolvable:$true] %s640
          %643 = dma.vmem_to_hbm [thread:$0]  %s641, 64, %s638, %s582
        $region44: #{least_square_tracking_forward.4} parent=27 // pred_fallthru
          _
      $region28: #{least_square_tracking_forward.4} parent=5 // pred_fallthru
        _
      %p644 = scmp.le.s32.totalorder 2, %s21
      // Predicated region
      $region45: #{least_square_tracking_forward.4} parent=5 // pred_check
        %p645 = pneg %p644
      $region46: #{least_square_tracking_forward.4} parent=5 // pred_check_branch
        %647 = sbr.rel (%p645) target = $region48
      $region47: #{least_square_tracking_forward.4} parent=5 // pred_region
        %s648 = ssub.s32 %s21, 2
        // Predicated region
        $region49: #{least_square_tracking_forward.4} parent=47 // pred_check
          %p649 = pneg %p97
        $region50: #{least_square_tracking_forward.4} parent=47 // pred_check_branch
          %651 = sbr.rel (%p649) target = $region52
        $region51: #{least_square_tracking_forward.4} parent=47 // pred_region
          %s652 = sand.u32 %s82, 1
          %s653 = scalar_lea.sflag [#allocation3], %s652
          %s654 = sand.u32 %s82, 1
          %s655 = smul.addr %s654, 32
          %s656 = scalar_lea.vmem [#allocation2], %s655
          %657 = dma.done %s653, 512
        $region52: #{least_square_tracking_forward.4} parent=47 // pred_fallthru
          _
        // Predicated region
        $region53: #{least_square_tracking_forward.4} parent=47 // pred_check
          %p658 = pneg %p123
        $region54: #{least_square_tracking_forward.4} parent=47 // pred_check_branch
          %660 = sbr.rel (%p658) target = $region56
        $region55: #{least_square_tracking_forward.4} parent=47 // pred_region
          %s661 = sand.u32 %s27, 1
          %s662 = scalar_lea.sflag [#allocation5], %s661
          %s663 = sand.u32 %s108, 1
          %s664 = smul.addr %s663, 16
          %s665 = scalar_lea.vmem [#allocation4], %s664
          %666 = dma.done %s662, 256
        $region56: #{least_square_tracking_forward.4} parent=47 // pred_fallthru
          _
        // Predicated region
        $region57: #{least_square_tracking_forward.4} parent=47 // pred_check
          %p667 = pneg %p149
        $region58: #{least_square_tracking_forward.4} parent=47 // pred_check_branch
          %669 = sbr.rel (%p667) target = $region60
        $region59: #{least_square_tracking_forward.4} parent=47 // pred_region
          %s670 = sand.u32 %s27, 1
          %s671 = scalar_lea.sflag [#allocation5], %s670
          %s672 = sand.u32 %s134, 1
          %s673 = smul.addr %s672, 8
          %s674 = scalar_lea.vmem [#allocation6], %s673
          %675 = dma.done %s671, 128
        $region60: #{least_square_tracking_forward.4} parent=47 // pred_fallthru
          _
        // Predicated region
        $region61: #{least_square_tracking_forward.4} parent=47 // pred_check
          %p676 = pneg %p175
        $region62: #{least_square_tracking_forward.4} parent=47 // pred_check_branch
          %678 = sbr.rel (%p676) target = $region64
        $region63: #{least_square_tracking_forward.4} parent=47 // pred_region
          %s679 = sand.u32 %s160, 1
          %s680 = scalar_lea.sflag [#allocation8], %s679
          %s681 = sand.u32 %s160, 1
          %s682 = smul.addr %s681, 4
          %s683 = scalar_lea.vmem [#allocation7], %s682
          %684 = dma.done %s680, 64
        $region64: #{least_square_tracking_forward.4} parent=47 // pred_fallthru
          _
      $region48: #{least_square_tracking_forward.4} parent=5 // pred_fallthru
        _
    $region6: #{least_square_tracking_forward.4} parent=1 // loop_footer
      %s25 = sadd.s32 1, %s21
    $region7: #{least_square_tracking_forward.4} parent=1 // loop_footer_branch
      %20 = sbr.rel target = $region3
    $region8: #{least_square_tracking_forward.4} parent=1 // loop_exit
      _
    %685 = vsyncpa [#allocation3], 1
    %s686 = scalar_lea.sflag [#allocation3], 1
    %687 = vsyncpa %s686, 1
    %688 = vsyncpa [#allocation5], 1
    %s689 = scalar_lea.sflag [#allocation5], 1
    %690 = vsyncpa %s689, 1
    %691 = vsyncpa [#allocation8], 1
    %s692 = scalar_lea.sflag [#allocation8], 1
    %693 = vsyncpa %s692, 1

// kernel: least_square_tracking_forward.6
$region0: #{least_square_tracking_forward.6}
  #allocation0 [shape = 'u32[]', space=smem, size = 0x4, offset = 0x4, fixed_abs, tag = 'smem constant byte address 0x4 - core index']
  #allocation1 [shape = 'u32[144,128]{1,0:T(1,128)}', space=vmem, size = 0x12000, scoped, tag = 'internal scratch']
  #allocation2 [shape = 'f32[1,1]{1,0:T(1,128)}', space=vmem, size = 0x200, scoped, tag = 'scratch operand']
  #allocation3 [shape = 'f32[1,1]{1,0:T(1,128)}', space=vmem, size = 0x200, scoped, tag = 'scratch operand']
  %s0 = inlined_call_operand.vmem [shape: f32[2,32,128], index: 0, kind: input, shape index: {}]
  %s1 = inlined_call_operand.vmem [shape: f32[128,64], index: 1, kind: input, shape index: {}]
  %s2 = inlined_call_operand.vmem [shape: f32[128,64], index: 2, kind: input, shape index: {}]
  %s3 = inlined_call_operand.hbm [shape: f32[2,32,128], index: 3, kind: output, shape index: {0}]
  %s4 = inlined_call_operand.hbm [shape: f32[2,16,64], index: 4, kind: output, shape index: {1}]
  %s5 = inlined_call_operand.hbm [shape: f32[2,8,32], index: 5, kind: output, shape index: {2}]
  %s6 = inlined_call_operand.hbm [shape: f32[2,4,16], index: 6, kind: output, shape index: {3}]
  %7 = xla_tuple %s3, %s4, %s5, %s6
  %s8 = sld [smem:[#allocation0]]
  $region81: #{least_square_tracking_forward.6} parent=0
    _
  %s10 = ssub.s32 1, %s8
  %s11 = scalar_select 0, %s10, %s8
  $region1: #{least_square_tracking_forward.6} parent=0
    #allocation4 [shape = 'u8[32768]{0}', space=vmem, size = 0x8000, scoped, tag = 'output window, operand 0']
    #allocation5 [shape = 's32[2]{0}', space=sflag, size = 0x8, scoped, tag = 'scoped memory for least_square_tracking_forward.6']
    #allocation6 [shape = 'u8[16384]{0}', space=vmem, size = 0x4000, scoped, tag = 'output window, operand 1']
    #allocation7 [shape = 's32[2]{0}', space=sflag, size = 0x8, scoped, tag = 'scoped memory for least_square_tracking_forward.6']
    #allocation8 [shape = 'u8[8192]{0}', space=vmem, size = 0x2000, scoped, tag = 'output window, operand 2']
    #allocation9 [shape = 'u8[4096]{0}', space=vmem, size = 0x1000, scoped, tag = 'output window, operand 3']
    #allocation10 [shape = 's32[2]{0}', space=sflag, size = 0x8, scoped, tag = 'scoped memory for least_square_tracking_forward.6']
    %12 = vsyncpa [#allocation5], 0
    %s13 = scalar_lea.sflag [#allocation5], 1
    %14 = vsyncpa %s13, 0
    %15 = vsyncpa [#allocation7], 0
    %s16 = scalar_lea.sflag [#allocation7], 1
    %17 = vsyncpa %s16, 0
    %18 = vsyncpa [#allocation10], 0
    %s19 = scalar_lea.sflag [#allocation10], 1
    %20 = vsyncpa %s19, 0
    loop: start=0, step=1, limit=6
    $region2: #{least_square_tracking_forward.6} parent=1 // loop_pre_header
      _
    $region3: #{least_square_tracking_forward.6} parent=1 // loop_header
      %s22 = sphi 0, %s26
      %p23 = scmp.ge.s32.totalorder %s22, 6
      %s29 = sphi 0, %s41
      %s30 = sphi 0, %s37
      %s31 = sphi 0, %s29
      %s32 = sphi 0, %s30
      %s33 = sphi 0, %s31
      %s34 = sphi 0, %s32
      %s44 = sphi 0, %s46
      %s47 = sphi 0, %s44
      %s48 = sphi 0, %s47
      %s64 = sphi 0, %s48
      %s68 = sphi 0, %s68
      %s70 = sphi 0, %s68
      %s71 = sphi 0, %s70
      %s85 = sphi 0, %s71
      %s89 = sphi 0, %s89
      %s91 = sphi 0, %s89
      %s92 = sphi 0, %s91
      %s106 = sphi 0, %s92
      %s114 = sphi 0, %s116
      %s117 = sphi 0, %s114
      %s118 = sphi 0, %s117
      %s134 = sphi 0, %s118
      %s142 = sphi 0, %s144
      %s145 = sphi 0, %s142
      %s146 = sphi 0, %s145
      %s162 = sphi 0, %s146
      %s170 = sphi 0, %s172
      %s173 = sphi 0, %s170
      %s174 = sphi 0, %s173
      %s190 = sphi 0, %s174
      %s198 = sphi 0, %s200
      %s201 = sphi 0, %s198
      %s202 = sphi 0, %s201
      %s218 = sphi 0, %s202
    $region4: #{least_square_tracking_forward.6} parent=1 // loop_header_branch
      %25 = sbr.rel (%p23) target = $region8
    $region5: #{least_square_tracking_forward.6} parent=1 // loop_body
      %s27 = ssub.s32 %s22, 1
      %s28 = ssub.s32 %s22, 2
      %s35 = sadd.s32 1, %s30
      %p36 = scmp.ge.s32.totalorder %s35, 2
      %s37 = scalar_select %p36, 0, %s35
      %s38 = sadd.s32 1, %s29
      %s39 = scalar_select %p36, %s38, %s29
      %p40 = scmp.ge.s32.totalorder %s39, 2
      %s41 = scalar_select %p40, 0, %s39
      %s42 = ssub.s32 %s30, %s37
      %p43 = scmp.eq.s32.totalorder %s42, 0
      %s45 = sadd.s32 %s44, 1
      %s46 = scalar_select %p43, %s44, %s45
      %p49 = pneg %p43
      %p50 = scmp.eq.s32.totalorder %s22, 3
      %p51 = por %p49, %p50
      %p52 = scmp.ne.s32.totalorder %s44, %s47
      %p53 = scmp.eq.s32.totalorder %s22, 0
      %p54 = por %p52, %p53
      %p55 = scmp.ne.s32.totalorder %s44, %s47
      %p56 = scmp.eq.s32.totalorder %s27, 3
      %p57 = por %p55, %p56
      %p58 = scmp.ne.s32.totalorder %s47, %s48
      %p59 = scmp.eq.s32.totalorder %s27, 0
      %p60 = por %p58, %p59
      %p61 = scmp.ne.s32.totalorder %s47, %s48
      %p62 = scmp.eq.s32.totalorder %s28, 3
      %p63 = por %p61, %p62
      %p65 = scmp.ne.s32.totalorder %s48, %s64
      %p66 = scmp.eq.s32.totalorder %s28, 0
      %p67 = por %p65, %p66
      %s69 = sadd.s32 %s68, 1
      %p72 = scmp.eq.s32.totalorder %s22, 3
      %p73 = scmp.ne.s32.totalorder %s68, %s70
      %p74 = scmp.eq.s32.totalorder %s22, 0
      %p75 = por %p73, %p74
      %p76 = scmp.ne.s32.totalorder %s68, %s70
      %p77 = scmp.eq.s32.totalorder %s27, 3
      %p78 = por %p76, %p77
      %p79 = scmp.ne.s32.totalorder %s70, %s71
      %p80 = scmp.eq.s32.totalorder %s27, 0
      %p81 = por %p79, %p80
      %p82 = scmp.ne.s32.totalorder %s70, %s71
      %p83 = scmp.eq.s32.totalorder %s28, 3
      %p84 = por %p82, %p83
      %p86 = scmp.ne.s32.totalorder %s71, %s85
      %p87 = scmp.eq.s32.totalorder %s28, 0
      %p88 = por %p86, %p87
      %s90 = sadd.s32 %s89, 1
      %p93 = scmp.eq.s32.totalorder %s22, 3
      %p94 = scmp.ne.s32.totalorder %s89, %s91
      %p95 = scmp.eq.s32.totalorder %s22, 0
      %p96 = por %p94, %p95
      %p97 = scmp.ne.s32.totalorder %s89, %s91
      %p98 = scmp.eq.s32.totalorder %s27, 3
      %p99 = por %p97, %p98
      %p100 = scmp.ne.s32.totalorder %s91, %s92
      %p101 = scmp.eq.s32.totalorder %s27, 0
      %p102 = por %p100, %p101
      %p103 = scmp.ne.s32.totalorder %s91, %s92
      %p104 = scmp.eq.s32.totalorder %s28, 3
      %p105 = por %p103, %p104
      %p107 = scmp.ne.s32.totalorder %s92, %s106
      %p108 = scmp.eq.s32.totalorder %s28, 0
      %p109 = por %p107, %p108
      %s110 = smul.u32 %s30, %s29
      %s111 = smul.u32 %s37, %s41
      %s112 = ssub.s32 %s110, %s111
      %p113 = scmp.eq.s32.totalorder %s112, 0
      %s115 = sadd.s32 %s114, 1
      %s116 = scalar_select %p113, %s114, %s115
      %p119 = pneg %p113
      %p120 = scmp.eq.s32.totalorder %s22, 3
      %p121 = por %p119, %p120
      %p122 = scmp.ne.s32.totalorder %s114, %s117
      %p123 = scmp.eq.s32.totalorder %s22, 0
      %p124 = por %p122, %p123
      %p125 = scmp.ne.s32.totalorder %s114, %s117
      %p126 = scmp.eq.s32.totalorder %s27, 3
      %p127 = por %p125, %p126
      %p128 = scmp.ne.s32.totalorder %s117, %s118
      %p129 = scmp.eq.s32.totalorder %s27, 0
      %p130 = por %p128, %p129
      %p131 = scmp.ne.s32.totalorder %s117, %s118
      %p132 = scmp.eq.s32.totalorder %s28, 3
      %p133 = por %p131, %p132
      %p135 = scmp.ne.s32.totalorder %s118, %s134
      %p136 = scmp.eq.s32.totalorder %s28, 0
      %p137 = por %p135, %p136
      %s138 = smul.u32 %s30, %s29
      %s139 = smul.u32 %s37, %s41
      %s140 = ssub.s32 %s138, %s139
      %p141 = scmp.eq.s32.totalorder %s140, 0
      %s143 = sadd.s32 %s142, 1
      %s144 = scalar_select %p141, %s142, %s143
      %p147 = pneg %p141
      %p148 = scmp.eq.s32.totalorder %s22, 3
      %p149 = por %p147, %p148
      %p150 = scmp.ne.s32.totalorder %s142, %s145
      %p151 = scmp.eq.s32.totalorder %s22, 0
      %p152 = por %p150, %p151
      %p153 = scmp.ne.s32.totalorder %s142, %s145
      %p154 = scmp.eq.s32.totalorder %s27, 3
      %p155 = por %p153, %p154
      %p156 = scmp.ne.s32.totalorder %s145, %s146
      %p157 = scmp.eq.s32.totalorder %s27, 0
      %p158 = por %p156, %p157
      %p159 = scmp.ne.s32.totalorder %s145, %s146
      %p160 = scmp.eq.s32.totalorder %s28, 3
      %p161 = por %p159, %p160
      %p163 = scmp.ne.s32.totalorder %s146, %s162
      %p164 = scmp.eq.s32.totalorder %s28, 0
      %p165 = por %p163, %p164
      %s166 = smul.u32 %s30, %s29
      %s167 = smul.u32 %s37, %s41
      %s168 = ssub.s32 %s166, %s167
      %p169 = scmp.eq.s32.totalorder %s168, 0
      %s171 = sadd.s32 %s170, 1
      %s172 = scalar_select %p169, %s170, %s171
      %p175 = pneg %p169
      %p176 = scmp.eq.s32.totalorder %s22, 3
      %p177 = por %p175, %p176
      %p178 = scmp.ne.s32.totalorder %s170, %s173
      %p179 = scmp.eq.s32.totalorder %s22, 0
      %p180 = por %p178, %p179
      %p181 = scmp.ne.s32.totalorder %s170, %s173
      %p182 = scmp.eq.s32.totalorder %s27, 3
      %p183 = por %p181, %p182
      %p184 = scmp.ne.s32.totalorder %s173, %s174
      %p185 = scmp.eq.s32.totalorder %s27, 0
      %p186 = por %p184, %p185
      %p187 = scmp.ne.s32.totalorder %s173, %s174
      %p188 = scmp.eq.s32.totalorder %s28, 3
      %p189 = por %p187, %p188
      %p191 = scmp.ne.s32.totalorder %s174, %s190
      %p192 = scmp.eq.s32.totalorder %s28, 0
      %p193 = por %p191, %p192
      %s194 = smul.u32 %s30, %s29
      %s195 = smul.u32 %s37, %s41
      %s196 = ssub.s32 %s194, %s195
      %p197 = scmp.eq.s32.totalorder %s196, 0
      %s199 = sadd.s32 %s198, 1
      %s200 = scalar_select %p197, %s198, %s199
      %p203 = pneg %p197
      %p204 = scmp.eq.s32.totalorder %s22, 3
      %p205 = por %p203, %p204
      %p206 = scmp.ne.s32.totalorder %s198, %s201
      %p207 = scmp.eq.s32.totalorder %s22, 0
      %p208 = por %p206, %p207
      %p209 = scmp.ne.s32.totalorder %s198, %s201
      %p210 = scmp.eq.s32.totalorder %s27, 3
      %p211 = por %p209, %p210
      %p212 = scmp.ne.s32.totalorder %s201, %s202
      %p213 = scmp.eq.s32.totalorder %s27, 0
      %p214 = por %p212, %p213
      %p215 = scmp.ne.s32.totalorder %s201, %s202
      %p216 = scmp.eq.s32.totalorder %s28, 3
      %p217 = por %p215, %p216
      %p219 = scmp.ne.s32.totalorder %s202, %s218
      %p220 = scmp.eq.s32.totalorder %s28, 0
      %p221 = por %p219, %p220
      %p222 = scmp.le.s32.totalorder 1, %s22
      %p223 = scmp.lt.s32.totalorder %s22, 5
      %p224 = pnand %p222, %p223
      %p225 = pneg %p224
      // Predicated region
      $region9: #{least_square_tracking_forward.6} parent=5 // pred_check
        _
      $region10: #{least_square_tracking_forward.6} parent=5 // pred_check_branch
        %227 = sbr.rel (%p224) target = $region12
      $region11: #{least_square_tracking_forward.6} parent=5 // pred_region
        %s228 = ssub.s32 %s22, 1
        // Predicated region
        $region13: #{least_square_tracking_forward.6} parent=11 // pred_check
          %p229 = pneg %p81
        $region14: #{least_square_tracking_forward.6} parent=11 // pred_check_branch
          %231 = sbr.rel (%p229) target = $region16
        $region15: #{least_square_tracking_forward.6} parent=11 // pred_region
          _
        $region16: #{least_square_tracking_forward.6} parent=11 // pred_fallthru
          _
        // Predicated region
        $region17: #{least_square_tracking_forward.6} parent=11 // pred_check
          %p232 = pneg %p102
        $region18: #{least_square_tracking_forward.6} parent=11 // pred_check_branch
          %234 = sbr.rel (%p232) target = $region20
        $region19: #{least_square_tracking_forward.6} parent=11 // pred_region
          _
        $region20: #{least_square_tracking_forward.6} parent=11 // pred_fallthru
          _
      $region12: #{least_square_tracking_forward.6} parent=5 // pred_fallthru
        _
      %p235 = scmp.lt.s32.totalorder %s22, 4
      // Predicated region
      $region21: #{least_square_tracking_forward.6} parent=5 // pred_check
        %p236 = pneg %p235
      $region22: #{least_square_tracking_forward.6} parent=5 // pred_check_branch
        %238 = sbr.rel (%p236) target = $region24
      $region23: #{least_square_tracking_forward.6} parent=5 // pred_region
        // Predicated region
        $region25: #{least_square_tracking_forward.6} parent=23 // pred_check
          %p239 = pneg %p54
        $region26: #{least_square_tracking_forward.6} parent=23 // pred_check_branch
          %241 = sbr.rel (%p239) target = $region28
        $region27: #{least_square_tracking_forward.6} parent=23 // pred_region
          %p242 = scmp.lt.s32.totalorder %s30, 1
          %s243 = scalar_select %p242, %s30, 1
          %s244 = smul.addr %s243, 4
          %s245 = smul.addr %s244, 8
          %s246 = scalar_lea.vmem %s0, %s245
        $region28: #{least_square_tracking_forward.6} parent=23 // pred_fallthru
          _
      $region24: #{least_square_tracking_forward.6} parent=5 // pred_fallthru
        _
      %p247 = scmp.le.s32.totalorder 1, %s22
      %p248 = scmp.lt.s32.totalorder %s22, 5
      %p249 = pnand %p247, %p248
      %p250 = pneg %p249
      // Predicated region
      $region29: #{least_square_tracking_forward.6} parent=5 // pred_check
        _
      $region30: #{least_square_tracking_forward.6} parent=5 // pred_check_branch
        %252 = sbr.rel (%p249) target = $region32
      $region31: #{least_square_tracking_forward.6} parent=5 // pred_region
        %s253 = ssub.s32 %s22, 1
        %p254 = scmp.lt.s32.totalorder %s32, 1
        %s255 = scalar_select %p254, %s32, 1
        %s256 = smul.addr %s255, 4
        %s257 = smul.addr %s256, 8
        %s258 = scalar_lea.vmem %s0, %s257
        %p259 = pneg %p60
        %p260 = pneg %p57
        %p261 = pneg %p81
        %p262 = pneg %p78
        %p263 = pneg %p102
        %p264 = pneg %p99
        %p265 = pneg %p130
        %p266 = pneg %p127
        %s267 = sand.u32 %s117, 1
        %s268 = scalar_lea.sflag [#allocation5], %s267
        %s269 = sand.u32 %s117, 1
        %s270 = smul.addr %s269, 32
        %s271 = scalar_lea.vmem [#allocation4], %s270
        %p272 = pneg %p158
        %p273 = pneg %p155
        %s274 = sand.u32 %s27, 1
        %s275 = scalar_lea.sflag [#allocation7], %s274
        %s276 = sand.u32 %s145, 1
        %s277 = smul.addr %s276, 16
        %s278 = scalar_lea.vmem [#allocation6], %s277
        %p279 = pneg %p186
        %p280 = pneg %p183
        %s281 = sand.u32 %s27, 1
        %s282 = scalar_lea.sflag [#allocation7], %s281
        %s283 = sand.u32 %s173, 1
        %s284 = smul.addr %s283, 8
        %s285 = scalar_lea.vmem [#allocation8], %s284
        %p286 = pneg %p214
        %p287 = pneg %p211
        %s288 = sand.u32 %s201, 1
        %s289 = scalar_lea.sflag [#allocation10], %s288
        %s290 = sand.u32 %s201, 1
        %s291 = smul.addr %s290, 4
        %s292 = scalar_lea.vmem [#allocation9], %s291
        %p293 = scmp.lt.s32.totalorder %s32, 1
        %s294 = scalar_select %p293, %s32, 1
        %s295 = smul.addr %s294, 4
        %s296 = smul.addr %s295, 8
        %s297 = scalar_lea.vmem %s0, %s296
        %s298 = smul.u32 %s32, %s31
        %s299 = smul.u32 %s32, %s31
        %s300 = smul.u32 %s32, %s31
        %s301 = smul.u32 %s32, %s31
        %p302 = scmp.eq.s32.totalorder %s31, 0
        %p303 = scmp.eq.s32.totalorder %s32, 0
        %p304 = pnand %p302, %p303
        %p305 = pneg %p304
        // Predicated region
        $region33: #{least_square_tracking_forward.6} parent=31 // pred_check
          _
        $region34: #{least_square_tracking_forward.6} parent=31 // pred_check_branch
          %307 = sbr.rel (%p304) target = $region36
        $region35: #{least_square_tracking_forward.6} parent=31 // pred_region
          %vm308 = vcmask 0
          %309 = vst.msk [vmem:[#allocation2] sm:$0x1] %vm308, inf
          %310 = vst.msk [vmem:[#allocation3] sm:$0x1] %vm308, -inf
        $region36: #{least_square_tracking_forward.6} parent=31 // pred_fallthru
          _
        // Predicated region
        $region37: #{least_square_tracking_forward.6} parent=31 // pred_check
          %p311 = pneg %p302
        $region38: #{least_square_tracking_forward.6} parent=31 // pred_check_branch
          %313 = sbr.rel (%p311) target = $region40
        $region39: #{least_square_tracking_forward.6} parent=31 // pred_region
          %v314 = vld [vmem:[%s297] sm:$0xff]
          %v315 = vld [vmem:[%s297 + $0x8] sm:$0xff]
          %v316 = vld [vmem:[%s297 + $0x10] sm:$0xff]
          %v317 = vld [vmem:[%s297 + $0x18] sm:$0xff]
          %v318 = vrcp.pop %v314
          %v319 = vmul.f32 1.0, %v318
          %v320 = vrcp.pop %v315
          %v321 = vmul.f32 1.0, %v320
          %v322 = vrcp.pop %v316
          %v323 = vmul.f32 1.0, %v322
          %v324 = vrcp.pop %v317
          %v325 = vmul.f32 1.0, %v324
          %v326 = vmax.f32 %v319, 0.0
          %v327 = vmax.f32 %v321, 0.0
          %v328 = vmax.f32 %v323, 0.0
          %v329 = vmax.f32 %v325, 0.0
          %v330 = vmin.f32 %v326, 10.0
          %v331 = vmin.f32 %v327, 10.0
          %v332 = vmin.f32 %v328, 10.0
          %v333 = vmin.f32 %v329, 10.0
          %v334 = vld [vmem:[#allocation2] sm:$0x1]
          %v335 = vmin.f32 %v330, %v331
          %v336 = vmin.f32 %v332, %v333
          %v337 = vmin.f32 %v335, %v336
          %338 = vmin.xlane.f32.xlu0 %v337
          %v339 = vpop.xlane.xlu0 %338
          %v340 = vrot.slane %v339, 4
          %v341 = vmin.f32 %v339, %v340
          %v342 = vrot.slane %v341, 2
          %v343 = vmin.f32 %v341, %v342
          %v344 = vrot.slane %v343, 1
          %v345 = vmin.f32 %v343, %v344
          %s346 = vtos %v345
          %v347 = vstv %s346
          %v348 = vmin.f32 %v334, %v347
          %vm349 = vcmask 0
          %350 = vst.msk [vmem:[#allocation2] sm:$0x1] %vm349, %v348
          %v351 = vld [vmem:[#allocation3] sm:$0x1]
          %v352 = vmax.f32 %v330, %v331
          %v353 = vmax.f32 %v332, %v333
          %v354 = vmax.f32 %v352, %v353
          %355 = vmax.xlane.f32.xlu0 %v354
          %v356 = vpop.xlane.xlu0 %355
          %v357 = vrot.slane %v356, 4
          %v358 = vmax.f32 %v356, %v357
          %v359 = vrot.slane %v358, 2
          %v360 = vmax.f32 %v358, %v359
          %v361 = vrot.slane %v360, 1
          %v362 = vmax.f32 %v360, %v361
          %s363 = vtos %v362
          %v364 = vstv %s363
          %v365 = vmax.f32 %v351, %v364
          %366 = vst.msk [vmem:[#allocation3] sm:$0x1] %vm349, %v365
        $region40: #{least_square_tracking_forward.6} parent=31 // pred_fallthru
          _
        %p367 = scmp.eq.s32.totalorder %s31, 1
        // Predicated region
        $region41: #{least_square_tracking_forward.6} parent=31 // pred_check
          %p368 = pneg %p367
        $region42: #{least_square_tracking_forward.6} parent=31 // pred_check_branch
          %370 = sbr.rel (%p368) target = $region44
        $region43: #{least_square_tracking_forward.6} parent=31 // pred_region
          %v371 = vld [vmem:[#allocation2] sm:$0x1]
          %v372 = vld [vmem:[#allocation3] sm:$0x1]
          %vm373 = vcmp.eq.f32.partialorder %v372, %v371
          %v374 = vsel %vm373, 0.0, %v372
          %v375 = vld [vmem:[%s297] sm:$0xff]
          %v376 = vld [vmem:[%s297 + $0x8] sm:$0xff]
          %v377 = vld [vmem:[%s297 + $0x10] sm:$0xff]
          %v378 = vld [vmem:[%s297 + $0x18] sm:$0xff]
          %v379 = vrcp.pop %v375
          %v380 = vmul.f32 1.0, %v379
          %v381 = vrcp.pop %v376
          %v382 = vmul.f32 1.0, %v381
          %v383 = vrcp.pop %v377
          %v384 = vmul.f32 1.0, %v383
          %v385 = vrcp.pop %v378
          %v386 = vmul.f32 1.0, %v385
          %v387 = vmax.f32 %v380, 0.0
          %v388 = vmax.f32 %v382, 0.0
          %v389 = vmax.f32 %v384, 0.0
          %v390 = vmax.f32 %v386, 0.0
          %v391 = vmin.f32 %v387, 10.0
          %v392 = vmin.f32 %v388, 10.0
          %v393 = vmin.f32 %v389, 10.0
          %v394 = vmin.f32 %v390, 10.0
          %v396 = vlaneseq
          %v397 = vshrl.u32 %v396, 7
          %v398 = vsub.s32 0, %v397
          %v399 = vrot.slane %v371, %v398
          %400 = vset.pattern.permute.xlu0 0
          %401 = vperm.xlu0 %400, %v399
          %v402 = vpop.permute.xlu0 %401
          %vm404 = vcmp.eq.f32.partialorder %v391, %v402
          %vm405 = vcmp.eq.f32.partialorder %v392, %v402
          %vm406 = vcmp.eq.f32.partialorder %v393, %v402
          %vm407 = vcmp.eq.f32.partialorder %v394, %v402
          %v408 = vsel %vm404, 0.0, %v391
          %v409 = vsel %vm405, 0.0, %v392
          %v410 = vsel %vm406, 0.0, %v393
          %v411 = vsel %vm407, 0.0, %v394
          %v413 = vlaneseq
          %v414 = vshrl.u32 %v413, 7
          %v415 = vsub.s32 0, %v414
          %v416 = vrot.slane %v374, %v415
          %417 = vset.pattern.permute.xlu0 0
          %418 = vperm.xlu0 %417, %v416
          %v419 = vpop.permute.xlu0 %418
          %vm421 = vcmp.eq.f32.partialorder %v408, %v419
          %vm422 = vcmp.eq.f32.partialorder %v409, %v419
          %vm423 = vcmp.eq.f32.partialorder %v410, %v419
          %vm424 = vcmp.eq.f32.partialorder %v411, %v419
          %v425 = vsel %vm421, 0.0, %v408
          %v426 = vsel %vm422, 0.0, %v409
          %v427 = vsel %vm423, 0.0, %v410
          %v428 = vsel %vm424, 0.0, %v411
          %429 = vst [vmem:[%s271] sm:$0xff] %v425
          %430 = vst [vmem:[%s271 + $0x8] sm:$0xff] %v426
          %431 = vst [vmem:[%s271 + $0x10] sm:$0xff] %v427
          %432 = vst [vmem:[%s271 + $0x18] sm:$0xff] %v428
          %v433 = vld [vmem:[%s271] ss:$2 sm:$0xff]
          %s434 = scalar_lea.vmem %s271, 16 [#allocation4]
          %v435 = vld [vmem:[%s434] ss:$2 sm:$0xff]
          %s436 = scalar_lea.vmem %s271, 1 [#allocation4]
          %v437 = vld [vmem:[%s436] ss:$2 sm:$0xff]
          %s438 = scalar_lea.vmem %s271, 17 [#allocation4]
          %v439 = vld [vmem:[%s438] ss:$2 sm:$0xff]
          %v440 = vmax.f32 %v433, %v437
          %v441 = vmax.f32 %v435, %v439
          %442 = vrot.lane.b32.xlu0 %v440, 127
          %v443 = vpop.permute.xlu0 %442
          %444 = vrot.lane.b32.xlu0 %v441, 127
          %v445 = vpop.permute.xlu0 %444
          %v446 = vmax.f32 %v440, %v443
          %v447 = vmax.f32 %v441, %v445
          %v448 = vld [vmem:[%s1] sm:$0xff]
          %v449 = vld [vmem:[%s1 + $0x8] sm:$0xff]
          %v450 = vld [vmem:[%s1 + $0x10] sm:$0xff]
          %v451 = vld [vmem:[%s1 + $0x18] sm:$0xff]
          %v452 = vld [vmem:[%s1 + $0x20] sm:$0xff]
          %v453 = vld [vmem:[%s1 + $0x28] sm:$0xff]
          %v454 = vld [vmem:[%s1 + $0x30] sm:$0xff]
          %v455 = vld [vmem:[%s1 + $0x38] sm:$0xff]
          %v456 = vld [vmem:[%s1 + $0x40] sm:$0xff]
          %v457 = vld [vmem:[%s1 + $0x48] sm:$0xff]
          %v458 = vld [vmem:[%s1 + $0x50] sm:$0xff]
          %v459 = vld [vmem:[%s1 + $0x58] sm:$0xff]
          %v460 = vld [vmem:[%s1 + $0x60] sm:$0xff]
          %v461 = vld [vmem:[%s1 + $0x68] sm:$0xff]
          %v462 = vld [vmem:[%s1 + $0x70] sm:$0xff]
          %v463 = vld [vmem:[%s1 + $0x78] sm:$0xff]
          %464 = vmatprep.subr.mxu0 0.0
          %465 = vmatpush1.msra.mxu0 %v448
          %466 = vmatprep.subr.mxu0 0.0
          %467 = vmatpush1.msra.mxu0 %v449
          %468 = vmatprep.subr.mxu0 0.0
          %469 = vmatpush1.msra.mxu0 %v450
          %470 = vmatprep.subr.mxu0 0.0
          %471 = vmatpush1.msra.mxu0 %v451
          %472 = vmatprep.subr.mxu0 0.0
          %473 = vmatpush1.msra.mxu0 %v452
          %474 = vmatprep.subr.mxu0 0.0
          %475 = vmatpush1.msra.mxu0 %v453
          %476 = vmatprep.subr.mxu0 0.0
          %477 = vmatpush1.msra.mxu0 %v454
          %478 = vmatprep.subr.mxu0 0.0
          %479 = vmatpush1.msra.mxu0 %v455
          %480 = vmatprep.subr.mxu0 0.0
          %481 = vmatpush1.msra.mxu0 %v456
          %482 = vmatprep.subr.mxu0 0.0
          %483 = vmatpush1.msra.mxu0 %v457
          %484 = vmatprep.subr.mxu0 0.0
          %485 = vmatpush1.msra.mxu0 %v458
          %486 = vmatprep.subr.mxu0 0.0
          %487 = vmatpush1.msra.mxu0 %v459
          %488 = vmatprep.subr.mxu0 0.0
          %489 = vmatpush1.msra.mxu0 %v460
          %490 = vmatprep.subr.mxu0 0.0
          %491 = vmatpush1.msra.mxu0 %v461
          %492 = vmatprep.subr.mxu0 0.0
          %493 = vmatpush1.msra.mxu0 %v462
          %494 = vmatprep.subr.mxu0 0.0
          %495 = vmatpush1.msra.mxu0 %v463
          %496 = vmatprep.subr.mxu0 0.0
          %497 = vmatpush1.msra.mxu0 0.0
          %498 = vmatprep.subr.mxu0 0.0
          %499 = vmatpush1.msra.mxu0 0.0
          %500 = vmatprep.subr.mxu0 0.0
          %501 = vmatpush1.msra.mxu0 0.0
          %502 = vmatprep.subr.mxu0 0.0
          %503 = vmatpush1.msra.mxu0 0.0
          %504 = vmatprep.subr.mxu0 0.0
          %505 = vmatpush1.msra.mxu0 0.0
          %506 = vmatprep.subr.mxu0 0.0
          %507 = vmatpush1.msra.mxu0 0.0
          %508 = vmatprep.subr.mxu0 0.0
          %509 = vmatpush1.msra.mxu0 0.0
          %510 = vmatprep.subr.mxu0 0.0
          %511 = vmatpush1.msra.mxu0 0.0
          %512 = vmatprep.subr.mxu0 0.0
          %513 = vmatpush1.msra.mxu0 0.0
          %514 = vmatprep.subr.mxu0 0.0
          %515 = vmatpush1.msra.mxu0 0.0
          %516 = vmatprep.subr.mxu0 0.0
          %517 = vmatpush1.msra.mxu0 0.0
          %518 = vmatprep.subr.mxu0 0.0
          %519 = vmatpush1.msra.mxu0 0.0
          %520 = vmatprep.subr.mxu0 0.0
          %521 = vmatpush1.msra.mxu0 0.0
          %522 = vmatprep.subr.mxu0 0.0
          %523 = vmatpush1.msra.mxu0 0.0
          %524 = vmatprep.subr.mxu0 0.0
          %525 = vmatpush1.msra.mxu0 0.0
          %526 = vmatprep.subr.mxu0 0.0
          %527 = vmatpush1.msra.mxu0 0.0
          %528 = vmatprep.mubr.f32.mxu0 0.0
          %529 = vmatmul.mubr.f32.gmra.mrb[0].mxu0 %v446
          %v530 = vpop.f32.mrb[0].mxu0
          %v531 = vadd.f32 0.0, %v530
          %v532 = vpop.f32.mrb[0].mxu0
          %533 = vmatprep.mubr.f32.mxu0 0.0
          %534 = vmatmul.mubr.f32.gmra.mrb[0].mxu0 %v447
          %v535 = vpop.f32.mrb[0].mxu0
          %v536 = vadd.f32 0.0, %v535
          %v537 = vpop.f32.mrb[0].mxu0
          %538 = vdwg.mxu0
          %vm539 = vcmask 523264
          %540 = vst.msk [vmem:[%s278] sm:$0xff] %vm539, %v531
          %541 = vst.msk [vmem:[%s278 + $0x8] sm:$0xff] %vm539, %v536
          %v542 = vld [vmem:[%s278] ss:$2 sm:$0xff]
          %s543 = scalar_lea.vmem %s278, 1 [#allocation6]
          %v544 = vld [vmem:[%s543] ss:$2 sm:$0xff]
          %v545 = vmax.f32 %v542, %v544
          %v546 = vld [vmem:[%s1] sm:$0xff]
          %v547 = vld [vmem:[%s1 + $0x8] sm:$0xff]
          %v548 = vld [vmem:[%s1 + $0x10] sm:$0xff]
          %v549 = vld [vmem:[%s1 + $0x18] sm:$0xff]
          %v550 = vld [vmem:[%s1 + $0x20] sm:$0xff]
          %v551 = vld [vmem:[%s1 + $0x28] sm:$0xff]
          %v552 = vld [vmem:[%s1 + $0x30] sm:$0xff]
          %v553 = vld [vmem:[%s1 + $0x38] sm:$0xff]
          %v555 = vsel %vm539, %v545, 0
          %557 = vmatprep.subr.mxu0 0.0
          %558 = vmatpush1.msra.mxu0 %v546
          %559 = vmatprep.subr.mxu0 0.0
          %560 = vmatpush1.msra.mxu0 %v547
          %561 = vmatprep.subr.mxu0 0.0
          %562 = vmatpush1.msra.mxu0 %v548
          %563 = vmatprep.subr.mxu0 0.0
          %564 = vmatpush1.msra.mxu0 %v549
          %565 = vmatprep.subr.mxu0 0.0
          %566 = vmatpush1.msra.mxu0 %v550
          %567 = vmatprep.subr.mxu0 0.0
          %568 = vmatpush1.msra.mxu0 %v551
          %569 = vmatprep.subr.mxu0 0.0
          %570 = vmatpush1.msra.mxu0 %v552
          %571 = vmatprep.subr.mxu0 0.0
          %572 = vmatpush1.msra.mxu0 %v553
          %573 = vmatprep.subr.mxu0 0.0
          %574 = vmatpush1.msra.mxu0 0.0
          %575 = vmatprep.subr.mxu0 0.0
          %576 = vmatpush1.msra.mxu0 0.0
          %577 = vmatprep.subr.mxu0 0.0
          %578 = vmatpush1.msra.mxu0 0.0
          %579 = vmatprep.subr.mxu0 0.0
          %580 = vmatpush1.msra.mxu0 0.0
          %581 = vmatprep.subr.mxu0 0.0
          %582 = vmatpush1.msra.mxu0 0.0
          %583 = vmatprep.subr.mxu0 0.0
          %584 = vmatpush1.msra.mxu0 0.0
          %585 = vmatprep.subr.mxu0 0.0
          %586 = vmatpush1.msra.mxu0 0.0
          %587 = vmatprep.subr.mxu0 0.0
          %588 = vmatpush1.msra.mxu0 0.0
          %589 = vmatprep.subr.mxu0 0.0
          %590 = vmatpush1.msra.mxu0 0.0
          %591 = vmatprep.subr.mxu0 0.0
          %592 = vmatpush1.msra.mxu0 0.0
          %593 = vmatprep.subr.mxu0 0.0
          %594 = vmatpush1.msra.mxu0 0.0
          %595 = vmatprep.subr.mxu0 0.0
          %596 = vmatpush1.msra.mxu0 0.0
          %597 = vmatprep.subr.mxu0 0.0
          %598 = vmatpush1.msra.mxu0 0.0
          %599 = vmatprep.subr.mxu0 0.0
          %600 = vmatpush1.msra.mxu0 0.0
          %601 = vmatprep.subr.mxu0 0.0
          %602 = vmatpush1.msra.mxu0 0.0
          %603 = vmatprep.subr.mxu0 0.0
          %604 = vmatpush1.msra.mxu0 0.0
          %605 = vmatprep.subr.mxu0 0.0
          %606 = vmatpush1.msra.mxu0 0.0
          %607 = vmatprep.subr.mxu0 0.0
          %608 = vmatpush1.msra.mxu0 0.0
          %609 = vmatprep.subr.mxu0 0.0
          %610 = vmatpush1.msra.mxu0 0.0
          %611 = vmatprep.subr.mxu0 0.0
          %612 = vmatpush1.msra.mxu0 0.0
          %613 = vmatprep.subr.mxu0 0.0
          %614 = vmatpush1.msra.mxu0 0.0
          %615 = vmatprep.subr.mxu0 0.0
          %616 = vmatpush1.msra.mxu0 0.0
          %617 = vmatprep.subr.mxu0 0.0
          %618 = vmatpush1.msra.mxu0 0.0
          %619 = vmatprep.subr.mxu0 0.0
          %620 = vmatpush1.msra.mxu0 0.0
          %621 = vmatprep.mubr.f32.mxu0 0.0
          %622 = vmatmul.mubr.f32.gmra.mrb[0].mxu0 %v555
          %v623 = vpop.f32.mrb[0].mxu0
          %v624 = vadd.f32 0.0, %v623
          %v625 = vpop.f32.mrb[0].mxu0
          %626 = vdwg.mxu0
          %v627 = vld [vmem:[%s2] sm:$0xff]
          %v628 = vld [vmem:[%s2 + $0x8] sm:$0xff]
          %v629 = vld [vmem:[%s2 + $0x10] sm:$0xff]
          %v630 = vld [vmem:[%s2 + $0x18] sm:$0xff]
          %v631 = vld [vmem:[%s2 + $0x20] sm:$0xff]
          %v632 = vld [vmem:[%s2 + $0x28] sm:$0xff]
          %v633 = vld [vmem:[%s2 + $0x30] sm:$0xff]
          %v634 = vld [vmem:[%s2 + $0x38] sm:$0xff]
          %635 = vmatprep.subr.mxu0 0.0
          %636 = vmatpush1.msra.mxu0 %v627
          %637 = vmatprep.subr.mxu0 0.0
          %638 = vmatpush1.msra.mxu0 %v628
          %639 = vmatprep.subr.mxu0 0.0
          %640 = vmatpush1.msra.mxu0 %v629
          %641 = vmatprep.subr.mxu0 0.0
          %642 = vmatpush1.msra.mxu0 %v630
          %643 = vmatprep.subr.mxu0 0.0
          %644 = vmatpush1.msra.mxu0 %v631
          %645 = vmatprep.subr.mxu0 0.0
          %646 = vmatpush1.msra.mxu0 %v632
          %647 = vmatprep.subr.mxu0 0.0
          %648 = vmatpush1.msra.mxu0 %v633
          %649 = vmatprep.subr.mxu0 0.0
          %650 = vmatpush1.msra.mxu0 %v634
          %651 = vmatprep.subr.mxu0 0.0
          %652 = vmatpush1.msra.mxu0 0.0
          %653 = vmatprep.subr.mxu0 0.0
          %654 = vmatpush1.msra.mxu0 0.0
          %655 = vmatprep.subr.mxu0 0.0
          %656 = vmatpush1.msra.mxu0 0.0
          %657 = vmatprep.subr.mxu0 0.0
          %658 = vmatpush1.msra.mxu0 0.0
          %659 = vmatprep.subr.mxu0 0.0
          %660 = vmatpush1.msra.mxu0 0.0
          %661 = vmatprep.subr.mxu0 0.0
          %662 = vmatpush1.msra.mxu0 0.0
          %663 = vmatprep.subr.mxu0 0.0
          %664 = vmatpush1.msra.mxu0 0.0
          %665 = vmatprep.subr.mxu0 0.0
          %666 = vmatpush1.msra.mxu0 0.0
          %667 = vmatprep.subr.mxu0 0.0
          %668 = vmatpush1.msra.mxu0 0.0
          %669 = vmatprep.subr.mxu0 0.0
          %670 = vmatpush1.msra.mxu0 0.0
          %671 = vmatprep.subr.mxu0 0.0
          %672 = vmatpush1.msra.mxu0 0.0
          %673 = vmatprep.subr.mxu0 0.0
          %674 = vmatpush1.msra.mxu0 0.0
          %675 = vmatprep.subr.mxu0 0.0
          %676 = vmatpush1.msra.mxu0 0.0
          %677 = vmatprep.subr.mxu0 0.0
          %678 = vmatpush1.msra.mxu0 0.0
          %679 = vmatprep.subr.mxu0 0.0
          %680 = vmatpush1.msra.mxu0 0.0
          %681 = vmatprep.subr.mxu0 0.0
          %682 = vmatpush1.msra.mxu0 0.0
          %683 = vmatprep.subr.mxu0 0.0
          %684 = vmatpush1.msra.mxu0 0.0
          %685 = vmatprep.subr.mxu0 0.0
          %686 = vmatpush1.msra.mxu0 0.0
          %687 = vmatprep.subr.mxu0 0.0
          %688 = vmatpush1.msra.mxu0 0.0
          %689 = vmatprep.subr.mxu0 0.0
          %690 = vmatpush1.msra.mxu0 0.0
          %691 = vmatprep.subr.mxu0 0.0
          %692 = vmatpush1.msra.mxu0 0.0
          %693 = vmatprep.subr.mxu0 0.0
          %694 = vmatpush1.msra.mxu0 0.0
          %695 = vmatprep.subr.mxu0 0.0
          %696 = vmatpush1.msra.mxu0 0.0
          %697 = vmatprep.subr.mxu0 0.0
          %698 = vmatpush1.msra.mxu0 0.0
          %699 = vmatprep.mubr.f32.mxu0 0.0
          %700 = vmatmul.mubr.f32.gmra.mrb[0].mxu0 %v555
          %v701 = vpop.f32.mrb[0].mxu0
          %v702 = vadd.f32 0.0, %v701
          %v703 = vpop.f32.mrb[0].mxu0
          %704 = vdwg.mxu0
          %v705 = vmax.f32 %v624, %v702
          %vm706 = vcmask 261120
          %707 = vst.msk [vmem:[%s285] sm:$0xff] %vm706, %v705
          %v708 = vld [vmem:[%s285] ss:$2 sm:$0xf]
          %s709 = scalar_lea.vmem %s285, 1 [#allocation8]
          %v710 = vld [vmem:[%s709] ss:$2 sm:$0xf]
          %v711 = vmax.f32 %v708, %v710
          %v712 = vld [vmem:[%s1] sm:$0xff]
          %v713 = vld [vmem:[%s1 + $0x8] sm:$0xff]
          %v714 = vld [vmem:[%s1 + $0x10] sm:$0xff]
          %v715 = vld [vmem:[%s1 + $0x18] sm:$0xff]
          %v717 = vsel %vm706, %v711, 0
          %719 = vmatprep.subr.mxu0 0.0
          %720 = vmatpush1.msra.mxu0 %v712
          %721 = vmatprep.subr.mxu0 0.0
          %722 = vmatpush1.msra.mxu0 %v713
          %723 = vmatprep.subr.mxu0 0.0
          %724 = vmatpush1.msra.mxu0 %v714
          %725 = vmatprep.subr.mxu0 0.0
          %726 = vmatpush1.msra.mxu0 %v715
          %727 = vmatprep.subr.mxu0 0.0
          %728 = vmatpush1.msra.mxu0 0.0
          %729 = vmatprep.subr.mxu0 0.0
          %730 = vmatpush1.msra.mxu0 0.0
          %731 = vmatprep.subr.mxu0 0.0
          %732 = vmatpush1.msra.mxu0 0.0
          %733 = vmatprep.subr.mxu0 0.0
          %734 = vmatpush1.msra.mxu0 0.0
          %735 = vmatprep.subr.mxu0 0.0
          %736 = vmatpush1.msra.mxu0 0.0
          %737 = vmatprep.subr.mxu0 0.0
          %738 = vmatpush1.msra.mxu0 0.0
          %739 = vmatprep.subr.mxu0 0.0
          %740 = vmatpush1.msra.mxu0 0.0
          %741 = vmatprep.subr.mxu0 0.0
          %742 = vmatpush1.msra.mxu0 0.0
          %743 = vmatprep.subr.mxu0 0.0
          %744 = vmatpush1.msra.mxu0 0.0
          %745 = vmatprep.subr.mxu0 0.0
          %746 = vmatpush1.msra.mxu0 0.0
          %747 = vmatprep.subr.mxu0 0.0
          %748 = vmatpush1.msra.mxu0 0.0
          %749 = vmatprep.subr.mxu0 0.0
          %750 = vmatpush1.msra.mxu0 0.0
          %751 = vmatprep.subr.mxu0 0.0
          %752 = vmatpush1.msra.mxu0 0.0
          %753 = vmatprep.subr.mxu0 0.0
          %754 = vmatpush1.msra.mxu0 0.0
          %755 = vmatprep.subr.mxu0 0.0
          %756 = vmatpush1.msra.mxu0 0.0
          %757 = vmatprep.subr.mxu0 0.0
          %758 = vmatpush1.msra.mxu0 0.0
          %759 = vmatprep.subr.mxu0 0.0
          %760 = vmatpush1.msra.mxu0 0.0
          %761 = vmatprep.subr.mxu0 0.0
          %762 = vmatpush1.msra.mxu0 0.0
          %763 = vmatprep.subr.mxu0 0.0
          %764 = vmatpush1.msra.mxu0 0.0
          %765 = vmatprep.subr.mxu0 0.0
          %766 = vmatpush1.msra.mxu0 0.0
          %767 = vmatprep.subr.mxu0 0.0
          %768 = vmatpush1.msra.mxu0 0.0
          %769 = vmatprep.subr.mxu0 0.0
          %770 = vmatpush1.msra.mxu0 0.0
          %771 = vmatprep.subr.mxu0 0.0
          %772 = vmatpush1.msra.mxu0 0.0
          %773 = vmatprep.subr.mxu0 0.0
          %774 = vmatpush1.msra.mxu0 0.0
          %775 = vmatprep.subr.mxu0 0.0
          %776 = vmatpush1.msra.mxu0 0.0
          %777 = vmatprep.subr.mxu0 0.0
          %778 = vmatpush1.msra.mxu0 0.0
          %779 = vmatprep.subr.mxu0 0.0
          %780 = vmatpush1.msra.mxu0 0.0
          %781 = vmatprep.subr.mxu0 0.0
          %782 = vmatpush1.msra.mxu0 0.0
          %783 = vmatprep.mubr.f32.mxu0 0.0
          %784 = vmatmul.mubr.f32.gmra.mrb[0].mxu0 %v717
          %v785 = vpop.f32.mrb[0].mxu0
          %v786 = vadd.f32 0.0, %v785
          %v787 = vpop.f32.mrb[0].mxu0
          %788 = vdwg.mxu0
          %v789 = vld [vmem:[%s2] sm:$0xff]
          %v790 = vld [vmem:[%s2 + $0x8] sm:$0xff]
          %v791 = vld [vmem:[%s2 + $0x10] sm:$0xff]
          %v792 = vld [vmem:[%s2 + $0x18] sm:$0xff]
          %793 = vmatprep.subr.mxu0 0.0
          %794 = vmatpush1.msra.mxu0 %v789
          %795 = vmatprep.subr.mxu0 0.0
          %796 = vmatpush1.msra.mxu0 %v790
          %797 = vmatprep.subr.mxu0 0.0
          %798 = vmatpush1.msra.mxu0 %v791
          %799 = vmatprep.subr.mxu0 0.0
          %800 = vmatpush1.msra.mxu0 %v792
          %801 = vmatprep.subr.mxu0 0.0
          %802 = vmatpush1.msra.mxu0 0.0
          %803 = vmatprep.subr.mxu0 0.0
          %804 = vmatpush1.msra.mxu0 0.0
          %805 = vmatprep.subr.mxu0 0.0
          %806 = vmatpush1.msra.mxu0 0.0
          %807 = vmatprep.subr.mxu0 0.0
          %808 = vmatpush1.msra.mxu0 0.0
          %809 = vmatprep.subr.mxu0 0.0
          %810 = vmatpush1.msra.mxu0 0.0
          %811 = vmatprep.subr.mxu0 0.0
          %812 = vmatpush1.msra.mxu0 0.0
          %813 = vmatprep.subr.mxu0 0.0
          %814 = vmatpush1.msra.mxu0 0.0
          %815 = vmatprep.subr.mxu0 0.0
          %816 = vmatpush1.msra.mxu0 0.0
          %817 = vmatprep.subr.mxu0 0.0
          %818 = vmatpush1.msra.mxu0 0.0
          %819 = vmatprep.subr.mxu0 0.0
          %820 = vmatpush1.msra.mxu0 0.0
          %821 = vmatprep.subr.mxu0 0.0
          %822 = vmatpush1.msra.mxu0 0.0
          %823 = vmatprep.subr.mxu0 0.0
          %824 = vmatpush1.msra.mxu0 0.0
          %825 = vmatprep.subr.mxu0 0.0
          %826 = vmatpush1.msra.mxu0 0.0
          %827 = vmatprep.subr.mxu0 0.0
          %828 = vmatpush1.msra.mxu0 0.0
          %829 = vmatprep.subr.mxu0 0.0
          %830 = vmatpush1.msra.mxu0 0.0
          %831 = vmatprep.subr.mxu0 0.0
          %832 = vmatpush1.msra.mxu0 0.0
          %833 = vmatprep.subr.mxu0 0.0
          %834 = vmatpush1.msra.mxu0 0.0
          %835 = vmatprep.subr.mxu0 0.0
          %836 = vmatpush1.msra.mxu0 0.0
          %837 = vmatprep.subr.mxu0 0.0
          %838 = vmatpush1.msra.mxu0 0.0
          %839 = vmatprep.subr.mxu0 0.0
          %840 = vmatpush1.msra.mxu0 0.0
          %841 = vmatprep.subr.mxu0 0.0
          %842 = vmatpush1.msra.mxu0 0.0
          %843 = vmatprep.subr.mxu0 0.0
          %844 = vmatpush1.msra.mxu0 0.0
          %845 = vmatprep.subr.mxu0 0.0
          %846 = vmatpush1.msra.mxu0 0.0
          %847 = vmatprep.subr.mxu0 0.0
          %848 = vmatpush1.msra.mxu0 0.0
          %849 = vmatprep.subr.mxu0 0.0
          %850 = vmatpush1.msra.mxu0 0.0
          %851 = vmatprep.subr.mxu0 0.0
          %852 = vmatpush1.msra.mxu0 0.0
          %853 = vmatprep.subr.mxu0 0.0
          %854 = vmatpush1.msra.mxu0 0.0
          %855 = vmatprep.subr.mxu0 0.0
          %856 = vmatpush1.msra.mxu0 0.0
          %857 = vmatprep.mubr.f32.mxu0 0.0
          %858 = vmatmul.mubr.f32.gmra.mrb[0].mxu0 %v717
          %v859 = vpop.f32.mrb[0].mxu0
          %v860 = vadd.f32 0.0, %v859
          %v861 = vpop.f32.mrb[0].mxu0
          %862 = vdwg.mxu0
          %v863 = vmax.f32 %v786, %v860
          %vm864 = vcmask 125952
          %865 = vst.msk [vmem:[%s292] sm:$0xf] %vm864, %v863
        $region44: #{least_square_tracking_forward.6} parent=31 // pred_fallthru
          _
        %s866 = sand.u32 %s117, 1
        %s867 = scalar_lea.sflag [#allocation5], %s866
        %s868 = sand.u32 %s117, 1
        %s869 = smul.addr %s868, 32
        %s870 = scalar_lea.vmem [#allocation4], %s869
        %s871 = sand.u32 %s27, 1
        %s872 = scalar_lea.sflag [#allocation7], %s871
        %s873 = sand.u32 %s145, 1
        %s874 = smul.addr %s873, 16
        %s875 = scalar_lea.vmem [#allocation6], %s874
        %s876 = sand.u32 %s27, 1
        %s877 = scalar_lea.sflag [#allocation7], %s876
        %s878 = sand.u32 %s173, 1
        %s879 = smul.addr %s878, 8
        %s880 = scalar_lea.vmem [#allocation8], %s879
        %s881 = sand.u32 %s201, 1
        %s882 = scalar_lea.sflag [#allocation10], %s881
        %s883 = sand.u32 %s201, 1
        %s884 = smul.addr %s883, 4
        %s885 = scalar_lea.vmem [#allocation9], %s884
        // Predicated region
        $region45: #{least_square_tracking_forward.6} parent=31 // pred_check
          %p886 = pneg %p127
        $region46: #{least_square_tracking_forward.6} parent=31 // pred_check_branch
          %888 = sbr.rel (%p886) target = $region48
        $region47: #{least_square_tracking_forward.6} parent=31 // pred_region
          %s889 = smul.u32 %s32, %s31
          %s891 = ssub.s32 512, 512
          %892 = vsyncadd %s867, %s891
          %s893 = smul.addr %s889, 4
          %s894 = smul.addr %s893, 128
          %s895 = scalar_lea.hbm %s3, %s894
          %s896 = sshll.u32 %s870, 4
          %s897 = int_to_ptr.vmem [resolvable:$true] %s896
          %902 = dma.vmem_to_hbm [thread:$0]  %s897, 512, %s895, %s867, 128, 128, 8
        $region48: #{least_square_tracking_forward.6} parent=31 // pred_fallthru
          _
        // Predicated region
        $region49: #{least_square_tracking_forward.6} parent=31 // pred_check
          %p903 = pneg %p155
        $region50: #{least_square_tracking_forward.6} parent=31 // pred_check_branch
          %905 = sbr.rel (%p903) target = $region52
        $region51: #{least_square_tracking_forward.6} parent=31 // pred_region
          %s906 = smul.u32 %s32, %s31
          %s908 = ssub.s32 256, 256
          %909 = vsyncadd %s872, %s908
          %s910 = smul.addr %s906, 2
          %s911 = smul.addr %s910, 128
          %s912 = scalar_lea.hbm %s4, %s911
          %s913 = sshll.u32 %s875, 4
          %s914 = int_to_ptr.vmem [resolvable:$true] %s913
          %919 = dma.vmem_to_hbm [thread:$0]  %s914, 256, %s912, %s872, 128, 128, 8
        $region52: #{least_square_tracking_forward.6} parent=31 // pred_fallthru
          _
        // Predicated region
        $region53: #{least_square_tracking_forward.6} parent=31 // pred_check
          %p920 = pneg %p183
        $region54: #{least_square_tracking_forward.6} parent=31 // pred_check_branch
          %922 = sbr.rel (%p920) target = $region56
        $region55: #{least_square_tracking_forward.6} parent=31 // pred_region
          %s923 = smul.u32 %s32, %s31
          %s925 = ssub.s32 128, 128
          %926 = vsyncadd %s877, %s925
          %s927 = smul.addr %s923, 128
          %s928 = scalar_lea.hbm %s5, %s927
          %s930 = sshll.u32 %s880, 4
          %s931 = int_to_ptr.vmem [resolvable:$true] %s930
          %933 = dma.vmem_to_hbm [thread:$0]  %s931, 128, %s928, %s877
        $region56: #{least_square_tracking_forward.6} parent=31 // pred_fallthru
          _
        // Predicated region
        $region57: #{least_square_tracking_forward.6} parent=31 // pred_check
          %p934 = pneg %p211
        $region58: #{least_square_tracking_forward.6} parent=31 // pred_check_branch
          %936 = sbr.rel (%p934) target = $region60
        $region59: #{least_square_tracking_forward.6} parent=31 // pred_region
          %s937 = smul.u32 %s32, %s31
          %s939 = ssub.s32 64, 64
          %940 = vsyncadd %s882, %s939
          %s941 = smul.addr %s937, 64
          %s942 = scalar_lea.hbm %s6, %s941
          %s944 = sshll.u32 %s885, 4
          %s945 = int_to_ptr.vmem [resolvable:$true] %s944
          %947 = dma.vmem_to_hbm [thread:$0]  %s945, 64, %s942, %s882
        $region60: #{least_square_tracking_forward.6} parent=31 // pred_fallthru
          _
      $region32: #{least_square_tracking_forward.6} parent=5 // pred_fallthru
        _
      %p948 = scmp.le.s32.totalorder 2, %s22
      // Predicated region
      $region61: #{least_square_tracking_forward.6} parent=5 // pred_check
        %p949 = pneg %p948
      $region62: #{least_square_tracking_forward.6} parent=5 // pred_check_branch
        %951 = sbr.rel (%p949) target = $region64
      $region63: #{least_square_tracking_forward.6} parent=5 // pred_region
        %s952 = ssub.s32 %s22, 2
        // Predicated region
        $region65: #{least_square_tracking_forward.6} parent=63 // pred_check
          %p953 = pneg %p133
        $region66: #{least_square_tracking_forward.6} parent=63 // pred_check_branch
          %955 = sbr.rel (%p953) target = $region68
        $region67: #{least_square_tracking_forward.6} parent=63 // pred_region
          %s956 = sand.u32 %s118, 1
          %s957 = scalar_lea.sflag [#allocation5], %s956
          %s958 = sand.u32 %s118, 1
          %s959 = smul.addr %s958, 32
          %s960 = scalar_lea.vmem [#allocation4], %s959
          %961 = dma.done %s957, 512
        $region68: #{least_square_tracking_forward.6} parent=63 // pred_fallthru
          _
        // Predicated region
        $region69: #{least_square_tracking_forward.6} parent=63 // pred_check
          %p962 = pneg %p161
        $region70: #{least_square_tracking_forward.6} parent=63 // pred_check_branch
          %964 = sbr.rel (%p962) target = $region72
        $region71: #{least_square_tracking_forward.6} parent=63 // pred_region
          %s965 = sand.u32 %s28, 1
          %s966 = scalar_lea.sflag [#allocation7], %s965
          %s967 = sand.u32 %s146, 1
          %s968 = smul.addr %s967, 16
          %s969 = scalar_lea.vmem [#allocation6], %s968
          %970 = dma.done %s966, 256
        $region72: #{least_square_tracking_forward.6} parent=63 // pred_fallthru
          _
        // Predicated region
        $region73: #{least_square_tracking_forward.6} parent=63 // pred_check
          %p971 = pneg %p189
        $region74: #{least_square_tracking_forward.6} parent=63 // pred_check_branch
          %973 = sbr.rel (%p971) target = $region76
        $region75: #{least_square_tracking_forward.6} parent=63 // pred_region
          %s974 = sand.u32 %s28, 1
          %s975 = scalar_lea.sflag [#allocation7], %s974
          %s976 = sand.u32 %s174, 1
          %s977 = smul.addr %s976, 8
          %s978 = scalar_lea.vmem [#allocation8], %s977
          %979 = dma.done %s975, 128
        $region76: #{least_square_tracking_forward.6} parent=63 // pred_fallthru
          _
        // Predicated region
        $region77: #{least_square_tracking_forward.6} parent=63 // pred_check
          %p980 = pneg %p217
        $region78: #{least_square_tracking_forward.6} parent=63 // pred_check_branch
          %982 = sbr.rel (%p980) target = $region80
        $region79: #{least_square_tracking_forward.6} parent=63 // pred_region
          %s983 = sand.u32 %s202, 1
          %s984 = scalar_lea.sflag [#allocation10], %s983
          %s985 = sand.u32 %s202, 1
          %s986 = smul.addr %s985, 4
          %s987 = scalar_lea.vmem [#allocation9], %s986
          %988 = dma.done %s984, 64
        $region80: #{least_square_tracking_forward.6} parent=63 // pred_fallthru
          _
      $region64: #{least_square_tracking_forward.6} parent=5 // pred_fallthru
        _
    $region6: #{least_square_tracking_forward.6} parent=1 // loop_footer
      %s26 = sadd.s32 1, %s22
    $region7: #{least_square_tracking_forward.6} parent=1 // loop_footer_branch
      %21 = sbr.rel target = $region3
    $region8: #{least_square_tracking_forward.6} parent=1 // loop_exit
      _
    %989 = vsyncpa [#allocation5], 1
    %s990 = scalar_lea.sflag [#allocation5], 1
    %991 = vsyncpa %s990, 1
    %992 = vsyncpa [#allocation7], 1
    %s993 = scalar_lea.sflag [#allocation7], 1
    %994 = vsyncpa %s993, 1
    %995 = vsyncpa [#allocation10], 1
    %s996 = scalar_lea.sflag [#allocation10], 1
    %997 = vsyncpa %s996, 1

</llo_original>
